<compile_context>
chip_gen: v6e
topology: v6e:2x2x1
jax: 0.10.0
libtpu: 0.0.40
codegen_flags: <defaults>
</compile_context>

<pallas_src>
import functools

import jax
import jax.numpy as jnp
from jax.experimental import pallas as pl
from jax.experimental.pallas import tpu as pltpu


def _round_up(v: int, m: int) -> int:
    return (v + m - 1) // m * m


@functools.lru_cache(maxsize=1)
def _vmem_capacity_bytes() -> int:
    """Physical VMEM of the local TPU generation (conservative fallback)."""
    try:
        return int(pltpu.get_tpu_info().vmem_capacity_bytes)
    except Exception:
        return 64 * 1024 * 1024  # v7x floor


def _make_conv_kernel(rc, n_chunks, owp, cp, tn):
    """Fused stride-2 3x3 conv kernel over one (batch, Cout-tile) grid step.

    rc       : output rows per in-kernel matmul chunk
    n_chunks : number of row chunks (OHp // rc)
    owp      : padded output width (multiple of the sublane tile)
    cp       : padded input channels (multiple of 128)
    tn       : Cout tile (multiple of 128)
    """
    m = rc * owp  # matmul M per chunk

    def kernel(ee_ref, eo_ref, oe_ref, oo_ref, w_ref, b_ref, o_ref):
        # tap k = kh*3 + kw of the 3x3 window, expressed on the phase planes:
        #   (plane, row offset, col slice start or None for full width)
        taps = (
            (ee_ref, 0, 0), (eo_ref, 0, None), (ee_ref, 0, 1),   # kh = 0
            (oe_ref, 0, 0), (oo_ref, 0, None), (oe_ref, 0, 1),   # kh = 1
            (ee_ref, 1, 0), (eo_ref, 1, None), (ee_ref, 1, 1),   # kh = 2
        )

        def chunk(c):
            r0 = c * rc
            acc = jnp.zeros((m, tn), jnp.float32)
            for k, (ref, dr, dc) in enumerate(taps):
                if dc is None:
                    xs = ref[0, pl.ds(r0 + dr, rc), :, :]
                else:
                    xs = ref[0, pl.ds(r0 + dr, rc), pl.ds(dc, owp), :]
                # (rc, owp, cp) -> (rc*owp, cp) is a layout-preserving merge
                # (owp is a multiple of the sublane tile).
                acc = acc + jnp.dot(xs.reshape(m, cp), w_ref[k],
                                    preferred_element_type=jnp.float32)
            res = (acc + b_ref[...]).astype(o_ref.dtype)
            o_ref[0, pl.ds(r0, rc), :, :] = res.reshape(rc, owp, tn)

        if n_chunks == 1:
            chunk(0)
        else:
            pl.loop(0, n_chunks)(chunk)

    return kernel


@functools.partial(jax.jit, static_argnames=("compute_dtype", "out_dtype"))
def downsample_forward(x, t, weight, bias, *,
                       compute_dtype=jnp.bfloat16, out_dtype=None):
    """Equivalent of Downsample.forward(x, t) -> conv3x3(stride=2, pad=1)(x).

    x:      (N, Cin, H, W)   NCHW, matching PyTorch
    weight: (Cout, Cin, 3, 3)
    bias:   (Cout,)
    returns (N, Cout, (H+1)//2, (W+1)//2) NCHW
    """
    del t  # unused by the module
    N, Cin, H, W = x.shape
    Cout = weight.shape[0]
    OH, OW = (H + 1) // 2, (W + 1) // 2

    cdt = jnp.dtype(compute_dtype)
    odt = jnp.dtype(out_dtype) if out_dtype is not None else x.dtype
    in_bytes = cdt.itemsize
    out_bytes = odt.itemsize

    # Lane / sublane aligned padded dims.
    Cp = _round_up(Cin, 128)
    Coutp = _round_up(Cout, 128)
    sub = 8 if in_bytes >= 4 else (16 if in_bytes == 2 else 32)
    OWp = _round_up(OW, sub)

    # Cout tiling: keep the weight fully resident in VMEM when it fits.
    tn = Coutp if Coutp <= 512 else 256
    n_j = Coutp // tn
    # v7x megacore: avoid a degenerate (1, 1) grid when Cout can be split.
    if N * n_j == 1 and Coutp % 256 == 0:
        tn = Coutp // 2
        n_j = 2

    # Output rows per in-kernel matmul chunk (bounds the f32 accumulator size).
    rc = max(1, min(OH, max(1, 512 // OWp)))
    OHp = _round_up(OH, rc)
    n_chunks = OHp // rc

    # --- single-pass layout prep (no 9x im2col tensor in HBM) ---------------
    # Zero-padded NHWC plane, then the four stride-2 phase planes:
    #   ee[r,c] = pad[2r,2c], eo[r,c] = pad[2r,2c+1],
    #   oe[r,c] = pad[2r+1,2c], oo[r,c] = pad[2r+1,2c+1]
    Hp, Wp = 2 * OHp + 1, 2 * OWp + 1
    x_nhwc = x.transpose(0, 2, 3, 1).astype(cdt)
    xpad = jnp.pad(x_nhwc,
                   ((0, 0), (1, Hp - H - 1), (1, Wp - W - 1), (0, Cp - Cin)))
    ee = xpad[:, 0::2, 0::2, :]   # (N, OHp+1, OWp+1, Cp)
    eo = xpad[:, 0::2, 1::2, :]   # (N, OHp+1, OWp,   Cp)
    oe = xpad[:, 1::2, 0::2, :]   # (N, OHp,   OWp+1, Cp)
    oo = xpad[:, 1::2, 1::2, :]   # (N, OHp,   OWp,   Cp)

    # Weight as 9 resident (Cp, Coutp) taps, k = kh*3 + kw; bias in f32.
    w9 = jnp.pad(weight.transpose(2, 3, 1, 0).reshape(9, Cin, Cout).astype(cdt),
                 ((0, 0), (0, Cp - Cin), (0, Coutp - Cout)))
    b2 = jnp.pad(bias.astype(jnp.float32), (0, Coutp - Cout)).reshape(1, Coutp)

    grid = (N, n_j)
    plane_map = lambda n, j: (n, 0, 0, 0)
    in_specs = [
        pl.BlockSpec((1, OHp + 1, OWp + 1, Cp), plane_map),
        pl.BlockSpec((1, OHp + 1, OWp, Cp), plane_map),
        pl.BlockSpec((1, OHp, OWp + 1, Cp), plane_map),
        pl.BlockSpec((1, OHp, OWp, Cp), plane_map),
        pl.BlockSpec((9, Cp, tn), lambda n, j: (0, 0, j)),   # weight (resident)
        pl.BlockSpec((1, tn), lambda n, j: (0, j)),          # bias row
    ]
    out_specs = pl.BlockSpec((1, OHp, OWp, tn), lambda n, j: (n, 0, 0, j))

    # Generation-aware VMEM limit (128 MiB on v5e/v6e, 64 MiB on v7x).
    phase_elems = ((OHp + 1) * (OWp + 1) + (OHp + 1) * OWp
                   + OHp * (OWp + 1) + OHp * OWp) * Cp
    est = 2 * (phase_elems * in_bytes            # double-buffered phase planes
               + 9 * Cp * tn * in_bytes          # weight
               + tn * 4                          # bias
               + OHp * OWp * tn * out_bytes)     # output block
    est += 2 * rc * OWp * (tn * 4 + Cp * in_bytes)   # in-kernel acc / tap temps
    cap = _vmem_capacity_bytes()
    vmem_limit = int(min(0.9 * cap, max(1.5 * est + (8 << 20), 32 << 20)))

    cost = pl.CostEstimate(
        flops=2 * N * OHp * OWp * 9 * Cp * Coutp,
        transcendentals=0,
        bytes_accessed=int(N * phase_elems * in_bytes
                           + 9 * Cp * Coutp * in_bytes
                           + 4 * Coutp
                           + N * OHp * OWp * Coutp * out_bytes),
    )

    kernel = _make_conv_kernel(rc, n_chunks, OWp, Cp, tn)

    out = pl.pallas_call(
        kernel,
        out_shape=jax.ShapeDtypeStruct((N, OHp, OWp, Coutp), odt),
        grid_spec=pltpu.PrefetchScalarGridSpec(
            num_scalar_prefetch=0,
            grid=grid,
            in_specs=in_specs,
            out_specs=out_specs,
        ),
        compiler_params=pltpu.CompilerParams(
            dimension_semantics=("parallel", "parallel"),
            vmem_limit_bytes=vmem_limit,
        ),
        cost_estimate=cost,
    )(ee, eo, oe, oo, w9, b2)

    out = out[:, :OH, :OW, :Cout]
    return out.transpose(0, 3, 1, 2)  # back to NCHW to match the PyTorch module


def init_params(key, n_channels):
    """Deterministic conv3x3 params: weight (C, C, 3, 3), bias (C,)."""
    kw, kb = jax.random.split(key)
    fan_in = n_channels * 3 * 3
    bound = 1.0 / jnp.sqrt(fan_in)  # PyTorch default uniform init bound
    weight = jax.random.uniform(kw, (n_channels, n_channels, 3, 3),
                                jnp.float32, -bound, bound)
    bias = jax.random.uniform(kb, (n_channels,), jnp.float32, -bound, bound)
    return weight, bias


if __name__ == "__main__":
    key = jax.random.PRNGKey(0)
    k_x, k_t, k_p = jax.random.split(key, 3)

    N, C, H, W = 2, 4, 16, 16
    x = jax.random.normal(k_x, (N, C, H, W), jnp.float32)
    t = jax.random.normal(k_t, (N, 32), jnp.float32)  # unused, as in the module

    weight, bias = init_params(k_p, C)
    OH, OW = (H + 1) // 2, (W + 1) // 2

    # Reference: XLA conv (stride 2, pad 1) + bias.
    ref = jax.lax.conv_general_dilated(
        x, weight, window_strides=(2, 2), padding=((1, 1), (1, 1)),
        dimension_numbers=("NCHW", "OIHW", "NCHW"),
    ) + bias.reshape(1, C, 1, 1)

    # f32 MXU path (tight match to reference).
    out_f32 = jax.block_until_ready(
        downsample_forward(x, t, weight, bias, compute_dtype=jnp.float32))
    assert out_f32.shape == (N, C, OH, OW), out_f32.shape
    assert jnp.allclose(out_f32, ref, atol=5e-4, rtol=5e-4), \
        float(jnp.max(jnp.abs(out_f32 - ref)))

    # Default path: bf16 MXU inputs, f32 accumulation (2x MXU / half HBM bytes).
    out_bf16 = jax.block_until_ready(downsample_forward(x, t, weight, bias))
    assert out_bf16.shape == (N, C, OH, OW), out_bf16.shape
    assert jnp.allclose(out_bf16, ref, atol=7e-2, rtol=7e-2), \
        float(jnp.max(jnp.abs(out_bf16 - ref)))

    print("KERNEL_OK")
</pallas_src>

<mosaic_0001>
module attributes {stable_mosaic.version = 11 : i64} {
  func.func @kernel(%arg0: i32, %arg1: i32, %arg2: memref<1x9x9x128xf32, #tpu.memory_space<vmem>>, %arg3: memref<1x9x8x128xf32, #tpu.memory_space<vmem>>, %arg4: memref<1x8x9x128xf32, #tpu.memory_space<vmem>>, %arg5: memref<1x8x8x128xf32, #tpu.memory_space<vmem>>, %arg6: memref<9x128x128xf32, #tpu.memory_space<vmem>>, %arg7: memref<1x128xf32, #tpu.memory_space<vmem>>, %arg8: memref<1x8x8x128xf32, #tpu.memory_space<vmem>>) attributes {dimension_semantics = [#tpu.dimension_semantics<parallel>, #tpu.dimension_semantics<parallel>], iteration_bounds = array<i64: 2, 1>, scalar_prefetch = 0 : i64, scratch_operands = 0 : i64, tpu.core_type = #tpu.core_type<tc>, window_params = [{transform_indices = @transform_0, window_bounds = array<i64: 1, 9, 9, 128>}, {transform_indices = @transform_1, window_bounds = array<i64: 1, 9, 8, 128>}, {transform_indices = @transform_2, window_bounds = array<i64: 1, 8, 9, 128>}, {transform_indices = @transform_3, window_bounds = array<i64: 1, 8, 8, 128>}, {transform_indices = @transform_4, window_bounds = array<i64: 9, 128, 128>}, {transform_indices = @transform_5, window_bounds = array<i64: 1, 128>}, {transform_indices = @transform_6, window_bounds = array<i64: 1, 8, 8, 128>}]} {
    %cst = arith.constant 0.000000e+00 : f32
    %0 = vector.broadcast %cst : f32 to vector<64x128xf32>
    %c0 = arith.constant 0 : index
    %c0_0 = arith.constant 0 : index
    %c0_1 = arith.constant 0 : index
    %c0_2 = arith.constant 0 : index
    %1 = vector.load %arg2[%c0, %c0_0, %c0_1, %c0_2] : memref<1x9x9x128xf32, #tpu.memory_space<vmem>>, vector<1x8x8x128xf32>
    %2 = vector.shape_cast %1 : vector<1x8x8x128xf32> to vector<8x8x128xf32>
    %3 = vector.shape_cast %2 : vector<8x8x128xf32> to vector<64x128xf32>
    %c0_3 = arith.constant 0 : index
    %c0_4 = arith.constant 0 : index
    %c0_5 = arith.constant 0 : index
    %4 = vector.load %arg6[%c0_3, %c0_4, %c0_5] : memref<9x128x128xf32, #tpu.memory_space<vmem>>, vector<1x128x128xf32>
    %5 = vector.shape_cast %4 : vector<1x128x128xf32> to vector<128x128xf32>
    %cst_6 = arith.constant dense<0.000000e+00> : vector<64x128xf32>
    %6 = tpu.matmul %3, %5, %cst_6 {dimension_numbers = #tpu.dot_dimension_numbers<[1], [0], [0], [1], [0, 0, 1, 1], [], []>} : vector<64x128xf32>, vector<128x128xf32>, vector<64x128xf32> -> vector<64x128xf32>
    %7 = arith.addf %0, %6 : vector<64x128xf32>
    %c0_7 = arith.constant 0 : index
    %c0_8 = arith.constant 0 : index
    %c0_9 = arith.constant 0 : index
    %c0_10 = arith.constant 0 : index
    %8 = vector.load %arg3[%c0_7, %c0_8, %c0_9, %c0_10] : memref<1x9x8x128xf32, #tpu.memory_space<vmem>>, vector<1x8x8x128xf32>
    %9 = vector.shape_cast %8 : vector<1x8x8x128xf32> to vector<8x8x128xf32>
    %10 = vector.shape_cast %9 : vector<8x8x128xf32> to vector<64x128xf32>
    %c1 = arith.constant 1 : index
    %c0_11 = arith.constant 0 : index
    %c0_12 = arith.constant 0 : index
    %11 = vector.load %arg6[%c1, %c0_11, %c0_12] : memref<9x128x128xf32, #tpu.memory_space<vmem>>, vector<1x128x128xf32>
    %12 = vector.shape_cast %11 : vector<1x128x128xf32> to vector<128x128xf32>
    %cst_13 = arith.constant dense<0.000000e+00> : vector<64x128xf32>
    %13 = tpu.matmul %10, %12, %cst_13 {dimension_numbers = #tpu.dot_dimension_numbers<[1], [0], [0], [1], [0, 0, 1, 1], [], []>} : vector<64x128xf32>, vector<128x128xf32>, vector<64x128xf32> -> vector<64x128xf32>
    %14 = arith.addf %7, %13 : vector<64x128xf32>
    %c0_14 = arith.constant 0 : index
    %c0_15 = arith.constant 0 : index
    %c1_16 = arith.constant 1 : index
    %c0_17 = arith.constant 0 : index
    %15 = vector.load %arg2[%c0_14, %c0_15, %c1_16, %c0_17] : memref<1x9x9x128xf32, #tpu.memory_space<vmem>>, vector<1x8x8x128xf32>
    %16 = vector.shape_cast %15 : vector<1x8x8x128xf32> to vector<8x8x128xf32>
    %17 = vector.shape_cast %16 : vector<8x8x128xf32> to vector<64x128xf32>
    %c2 = arith.constant 2 : index
    %c0_18 = arith.constant 0 : index
    %c0_19 = arith.constant 0 : index
    %18 = vector.load %arg6[%c2, %c0_18, %c0_19] : memref<9x128x128xf32, #tpu.memory_space<vmem>>, vector<1x128x128xf32>
    %19 = vector.shape_cast %18 : vector<1x128x128xf32> to vector<128x128xf32>
    %cst_20 = arith.constant dense<0.000000e+00> : vector<64x128xf32>
    %20 = tpu.matmul %17, %19, %cst_20 {dimension_numbers = #tpu.dot_dimension_numbers<[1], [0], [0], [1], [0, 0, 1, 1], [], []>} : vector<64x128xf32>, vector<128x128xf32>, vector<64x128xf32> -> vector<64x128xf32>
    %21 = arith.addf %14, %20 : vector<64x128xf32>
    %c0_21 = arith.constant 0 : index
    %c0_22 = arith.constant 0 : index
    %c0_23 = arith.constant 0 : index
    %c0_24 = arith.constant 0 : index
    %22 = vector.load %arg4[%c0_21, %c0_22, %c0_23, %c0_24] : memref<1x8x9x128xf32, #tpu.memory_space<vmem>>, vector<1x8x8x128xf32>
    %23 = vector.shape_cast %22 : vector<1x8x8x128xf32> to vector<8x8x128xf32>
    %24 = vector.shape_cast %23 : vector<8x8x128xf32> to vector<64x128xf32>
    %c3 = arith.constant 3 : index
    %c0_25 = arith.constant 0 : index
    %c0_26 = arith.constant 0 : index
    %25 = vector.load %arg6[%c3, %c0_25, %c0_26] : memref<9x128x128xf32, #tpu.memory_space<vmem>>, vector<1x128x128xf32>
    %26 = vector.shape_cast %25 : vector<1x128x128xf32> to vector<128x128xf32>
    %cst_27 = arith.constant dense<0.000000e+00> : vector<64x128xf32>
    %27 = tpu.matmul %24, %26, %cst_27 {dimension_numbers = #tpu.dot_dimension_numbers<[1], [0], [0], [1], [0, 0, 1, 1], [], []>} : vector<64x128xf32>, vector<128x128xf32>, vector<64x128xf32> -> vector<64x128xf32>
    %28 = arith.addf %21, %27 : vector<64x128xf32>
    %c0_28 = arith.constant 0 : index
    %c0_29 = arith.constant 0 : index
    %c0_30 = arith.constant 0 : index
    %c0_31 = arith.constant 0 : index
    %29 = vector.load %arg5[%c0_28, %c0_29, %c0_30, %c0_31] : memref<1x8x8x128xf32, #tpu.memory_space<vmem>>, vector<1x8x8x128xf32>
    %30 = vector.shape_cast %29 : vector<1x8x8x128xf32> to vector<8x8x128xf32>
    %31 = vector.shape_cast %30 : vector<8x8x128xf32> to vector<64x128xf32>
    %c4 = arith.constant 4 : index
    %c0_32 = arith.constant 0 : index
    %c0_33 = arith.constant 0 : index
    %32 = vector.load %arg6[%c4, %c0_32, %c0_33] : memref<9x128x128xf32, #tpu.memory_space<vmem>>, vector<1x128x128xf32>
    %33 = vector.shape_cast %32 : vector<1x128x128xf32> to vector<128x128xf32>
    %cst_34 = arith.constant dense<0.000000e+00> : vector<64x128xf32>
    %34 = tpu.matmul %31, %33, %cst_34 {dimension_numbers = #tpu.dot_dimension_numbers<[1], [0], [0], [1], [0, 0, 1, 1], [], []>} : vector<64x128xf32>, vector<128x128xf32>, vector<64x128xf32> -> vector<64x128xf32>
    %35 = arith.addf %28, %34 : vector<64x128xf32>
    %c0_35 = arith.constant 0 : index
    %c0_36 = arith.constant 0 : index
    %c1_37 = arith.constant 1 : index
    %c0_38 = arith.constant 0 : index
    %36 = vector.load %arg4[%c0_35, %c0_36, %c1_37, %c0_38] : memref<1x8x9x128xf32, #tpu.memory_space<vmem>>, vector<1x8x8x128xf32>
    %37 = vector.shape_cast %36 : vector<1x8x8x128xf32> to vector<8x8x128xf32>
    %38 = vector.shape_cast %37 : vector<8x8x128xf32> to vector<64x128xf32>
    %c5 = arith.constant 5 : index
    %c0_39 = arith.constant 0 : index
    %c0_40 = arith.constant 0 : index
    %39 = vector.load %arg6[%c5, %c0_39, %c0_40] : memref<9x128x128xf32, #tpu.memory_space<vmem>>, vector<1x128x128xf32>
    %40 = vector.shape_cast %39 : vector<1x128x128xf32> to vector<128x128xf32>
    %cst_41 = arith.constant dense<0.000000e+00> : vector<64x128xf32>
    %41 = tpu.matmul %38, %40, %cst_41 {dimension_numbers = #tpu.dot_dimension_numbers<[1], [0], [0], [1], [0, 0, 1, 1], [], []>} : vector<64x128xf32>, vector<128x128xf32>, vector<64x128xf32> -> vector<64x128xf32>
    %42 = arith.addf %35, %41 : vector<64x128xf32>
    %c0_42 = arith.constant 0 : index
    %c1_43 = arith.constant 1 : index
    %c0_44 = arith.constant 0 : index
    %c0_45 = arith.constant 0 : index
    %43 = vector.load %arg2[%c0_42, %c1_43, %c0_44, %c0_45] : memref<1x9x9x128xf32, #tpu.memory_space<vmem>>, vector<1x8x8x128xf32>
    %44 = vector.shape_cast %43 : vector<1x8x8x128xf32> to vector<8x8x128xf32>
    %45 = vector.shape_cast %44 : vector<8x8x128xf32> to vector<64x128xf32>
    %c6 = arith.constant 6 : index
    %c0_46 = arith.constant 0 : index
    %c0_47 = arith.constant 0 : index
    %46 = vector.load %arg6[%c6, %c0_46, %c0_47] : memref<9x128x128xf32, #tpu.memory_space<vmem>>, vector<1x128x128xf32>
    %47 = vector.shape_cast %46 : vector<1x128x128xf32> to vector<128x128xf32>
    %cst_48 = arith.constant dense<0.000000e+00> : vector<64x128xf32>
    %48 = tpu.matmul %45, %47, %cst_48 {dimension_numbers = #tpu.dot_dimension_numbers<[1], [0], [0], [1], [0, 0, 1, 1], [], []>} : vector<64x128xf32>, vector<128x128xf32>, vector<64x128xf32> -> vector<64x128xf32>
    %49 = arith.addf %42, %48 : vector<64x128xf32>
    %c0_49 = arith.constant 0 : index
    %c1_50 = arith.constant 1 : index
    %c0_51 = arith.constant 0 : index
    %c0_52 = arith.constant 0 : index
    %50 = vector.load %arg3[%c0_49, %c1_50, %c0_51, %c0_52] : memref<1x9x8x128xf32, #tpu.memory_space<vmem>>, vector<1x8x8x128xf32>
    %51 = vector.shape_cast %50 : vector<1x8x8x128xf32> to vector<8x8x128xf32>
    %52 = vector.shape_cast %51 : vector<8x8x128xf32> to vector<64x128xf32>
    %c7 = arith.constant 7 : index
    %c0_53 = arith.constant 0 : index
    %c0_54 = arith.constant 0 : index
    %53 = vector.load %arg6[%c7, %c0_53, %c0_54] : memref<9x128x128xf32, #tpu.memory_space<vmem>>, vector<1x128x128xf32>
    %54 = vector.shape_cast %53 : vector<1x128x128xf32> to vector<128x128xf32>
    %cst_55 = arith.constant dense<0.000000e+00> : vector<64x128xf32>
    %55 = tpu.matmul %52, %54, %cst_55 {dimension_numbers = #tpu.dot_dimension_numbers<[1], [0], [0], [1], [0, 0, 1, 1], [], []>} : vector<64x128xf32>, vector<128x128xf32>, vector<64x128xf32> -> vector<64x128xf32>
    %56 = arith.addf %49, %55 : vector<64x128xf32>
    %c0_56 = arith.constant 0 : index
    %c1_57 = arith.constant 1 : index
    %c1_58 = arith.constant 1 : index
    %c0_59 = arith.constant 0 : index
    %57 = vector.load %arg2[%c0_56, %c1_57, %c1_58, %c0_59] : memref<1x9x9x128xf32, #tpu.memory_space<vmem>>, vector<1x8x8x128xf32>
    %58 = vector.shape_cast %57 : vector<1x8x8x128xf32> to vector<8x8x128xf32>
    %59 = vector.shape_cast %58 : vector<8x8x128xf32> to vector<64x128xf32>
    %c8 = arith.constant 8 : index
    %c0_60 = arith.constant 0 : index
    %c0_61 = arith.constant 0 : index
    %60 = vector.load %arg6[%c8, %c0_60, %c0_61] : memref<9x128x128xf32, #tpu.memory_space<vmem>>, vector<1x128x128xf32>
    %61 = vector.shape_cast %60 : vector<1x128x128xf32> to vector<128x128xf32>
    %cst_62 = arith.constant dense<0.000000e+00> : vector<64x128xf32>
    %62 = tpu.matmul %59, %61, %cst_62 {dimension_numbers = #tpu.dot_dimension_numbers<[1], [0], [0], [1], [0, 0, 1, 1], [], []>} : vector<64x128xf32>, vector<128x128xf32>, vector<64x128xf32> -> vector<64x128xf32>
    %63 = arith.addf %56, %62 : vector<64x128xf32>
    %c0_63 = arith.constant 0 : index
    %c0_64 = arith.constant 0 : index
    %64 = vector.load %arg7[%c0_63, %c0_64] : memref<1x128xf32, #tpu.memory_space<vmem>>, vector<1x128xf32>
    %65 = vector.broadcast %64 : vector<1x128xf32> to vector<64x128xf32>
    %66 = arith.addf %63, %65 : vector<64x128xf32>
    %67 = vector.shape_cast %66 : vector<64x128xf32> to vector<8x8x128xf32>
    %c0_65 = arith.constant 0 : index
    %c0_66 = arith.constant 0 : index
    %c0_67 = arith.constant 0 : index
    %c0_68 = arith.constant 0 : index
    %68 = vector.load %arg8[%c0_65, %c0_66, %c0_67, %c0_68] : memref<1x8x8x128xf32, #tpu.memory_space<vmem>>, vector<1x8x8x128xf32>
    %69 = vector.shape_cast %68 : vector<1x8x8x128xf32> to vector<8x8x128xf32>
    %70 = vector.shape_cast %67 : vector<8x8x128xf32> to vector<1x8x8x128xf32>
    tpu.vector_store %arg8[%c0_65, %c0_66, %c0_67, %c0_68], %70 {strides = array<i32>} : memref<1x8x8x128xf32, #tpu.memory_space<vmem>>, vector<1x8x8x128xf32>,
    return
  }
  func.func @transform_0(%arg0: i32, %arg1: i32) -> (i32, i32, i32, i32) {
    %c0_i32 = arith.constant 0 : i32
    %c0_i32_0 = arith.constant 0 : i32
    %c0_i32_1 = arith.constant 0 : i32
    %c0_i32_2 = arith.constant 0 : i32
    return %arg0, %c0_i32, %c0_i32_0, %c0_i32_1 : i32, i32, i32, i32
  }
  func.func @transform_1(%arg0: i32, %arg1: i32) -> (i32, i32, i32, i32) {
    %c0_i32 = arith.constant 0 : i32
    %c0_i32_0 = arith.constant 0 : i32
    %c0_i32_1 = arith.constant 0 : i32
    %c0_i32_2 = arith.constant 0 : i32
    return %arg0, %c0_i32, %c0_i32_0, %c0_i32_1 : i32, i32, i32, i32
  }
  func.func @transform_2(%arg0: i32, %arg1: i32) -> (i32, i32, i32, i32) {
    %c0_i32 = arith.constant 0 : i32
    %c0_i32_0 = arith.constant 0 : i32
    %c0_i32_1 = arith.constant 0 : i32
    %c0_i32_2 = arith.constant 0 : i32
    return %arg0, %c0_i32, %c0_i32_0, %c0_i32_1 : i32, i32, i32, i32
  }
  func.func @transform_3(%arg0: i32, %arg1: i32) -> (i32, i32, i32, i32) {
    %c0_i32 = arith.constant 0 : i32
    %c0_i32_0 = arith.constant 0 : i32
    %c0_i32_1 = arith.constant 0 : i32
    %c0_i32_2 = arith.constant 0 : i32
    return %arg0, %c0_i32, %c0_i32_0, %c0_i32_1 : i32, i32, i32, i32
  }
  func.func @transform_4(%arg0: i32, %arg1: i32) -> (i32, i32, i32) {
    %c0_i32 = arith.constant 0 : i32
    %c0_i32_0 = arith.constant 0 : i32
    %c0_i32_1 = arith.constant 0 : i32
    return %c0_i32, %c0_i32_0, %arg1 : i32, i32, i32
  }
  func.func @transform_5(%arg0: i32, %arg1: i32) -> (i32, i32) {
    %c0_i32 = arith.constant 0 : i32
    %c0_i32_0 = arith.constant 0 : i32
    return %c0_i32, %arg1 : i32, i32
  }
  func.func @transform_6(%arg0: i32, %arg1: i32) -> (i32, i32, i32, i32) {
    %c0_i32 = arith.constant 0 : i32
    %c0_i32_0 = arith.constant 0 : i32
    %c0_i32_1 = arith.constant 0 : i32
    return %arg0, %c0_i32, %c0_i32_0, %arg1 : i32, i32, i32, i32
  }
}

</mosaic_0001>

<llo_original>
// kernel: downsample_forward.1
$region0: #{downsample_forward.1}
  #allocation0 [shape = 'u32[]', space=smem, size = 0x4, offset = 0x4, fixed_abs, tag = 'smem constant byte address 0x4 - core index']
  #allocation1 [shape = 'u32[144,128]{1,0:T(1,128)}', space=vmem, size = 0x12000, scoped, tag = 'internal scratch']
  %s0 = inlined_call_operand.vmem [shape: f32[2,9,9,128], index: 0, kind: input, shape index: {}]
  %s1 = inlined_call_operand.vmem [shape: f32[2,9,8,128], index: 1, kind: input, shape index: {}]
  %s2 = inlined_call_operand.vmem [shape: f32[2,8,9,128], index: 2, kind: input, shape index: {}]
  %s3 = inlined_call_operand.vmem [shape: f32[2,8,8,128], index: 3, kind: input, shape index: {}]
  %s4 = inlined_call_operand.vmem [shape: f32[9,128,128], index: 4, kind: input, shape index: {}]
  %s5 = inlined_call_operand.vmem [shape: f32[1,128], index: 5, kind: input, shape index: {}]
  %s6 = inlined_call_operand.vmem [shape: f32[2,8,8,128], index: 6, kind: output, shape index: {}]
  %s7 = sld [smem:[#allocation0]]
  $region57: #{downsample_forward.1} parent=0
    _
  %s9 = ssub.s32 1, %s7
  %s10 = scalar_select 0, %s9, %s7
  loop: start=0, step=1, limit=4
  $region2: #{downsample_forward.1} parent=0 // loop_pre_header
    _
  $region3: #{downsample_forward.1} parent=0 // loop_header
    %s12 = sphi 0, %s16
    %p13 = scmp.ge.s32.totalorder %s12, 4
    %s19 = sphi 0, %s31
    %s20 = sphi 0, %s27
    %s21 = sphi 0, %s19
    %s22 = sphi 0, %s20
    %s23 = sphi 0, %s21
    %s24 = sphi 0, %s22
    %s34 = sphi 0, %s36
    %s37 = sphi 0, %s34
    %s38 = sphi 0, %s37
    %s54 = sphi 0, %s38
    %s60 = sphi 0, %s62
    %s63 = sphi 0, %s60
    %s64 = sphi 0, %s63
    %s80 = sphi 0, %s64
    %s86 = sphi 0, %s88
    %s89 = sphi 0, %s86
    %s90 = sphi 0, %s89
    %s106 = sphi 0, %s90
    %s112 = sphi 0, %s114
    %s115 = sphi 0, %s112
    %s116 = sphi 0, %s115
    %s132 = sphi 0, %s116
    %s138 = sphi 0, %s140
    %s141 = sphi 0, %s138
    %s142 = sphi 0, %s141
    %s158 = sphi 0, %s142
    %s164 = sphi 0, %s166
    %s167 = sphi 0, %s164
    %s168 = sphi 0, %s167
    %s184 = sphi 0, %s168
    %s192 = sphi 0, %s194
    %s195 = sphi 0, %s192
    %s196 = sphi 0, %s195
    %s212 = sphi 0, %s196
  $region4: #{downsample_forward.1} parent=0 // loop_header_branch
    %15 = sbr.rel (%p13) target = $region8
  $region5: #{downsample_forward.1} parent=0 // loop_body
    %s17 = ssub.s32 %s12, 1
    %s18 = ssub.s32 %s12, 2
    %s25 = sadd.s32 1, %s20
    %p26 = scmp.ge.s32.totalorder %s25, 1
    %s27 = scalar_select %p26, 0, %s25
    %s28 = sadd.s32 1, %s19
    %s29 = scalar_select %p26, %s28, %s19
    %p30 = scmp.ge.s32.totalorder %s29, 2
    %s31 = scalar_select %p30, 0, %s29
    %s32 = ssub.s32 %s19, %s31
    %p33 = scmp.eq.s32.totalorder %s32, 0
    %s35 = sadd.s32 %s34, 1
    %s36 = scalar_select %p33, %s34, %s35
    %p39 = pneg %p33
    %p40 = scmp.eq.s32.totalorder %s12, 1
    %p41 = por %p39, %p40
    %p42 = scmp.ne.s32.totalorder %s34, %s37
    %p43 = scmp.eq.s32.totalorder %s12, 0
    %p44 = por %p42, %p43
    %p45 = scmp.ne.s32.totalorder %s34, %s37
    %p46 = scmp.eq.s32.totalorder %s17, 1
    %p47 = por %p45, %p46
    %p48 = scmp.ne.s32.totalorder %s37, %s38
    %p49 = scmp.eq.s32.totalorder %s17, 0
    %p50 = por %p48, %p49
    %p51 = scmp.ne.s32.totalorder %s37, %s38
    %p52 = scmp.eq.s32.totalorder %s18, 1
    %p53 = por %p51, %p52
    %p55 = scmp.ne.s32.totalorder %s38, %s54
    %p56 = scmp.eq.s32.totalorder %s18, 0
    %p57 = por %p55, %p56
    %s58 = ssub.s32 %s19, %s31
    %p59 = scmp.eq.s32.totalorder %s58, 0
    %s61 = sadd.s32 %s60, 1
    %s62 = scalar_select %p59, %s60, %s61
    %p65 = pneg %p59
    %p66 = scmp.eq.s32.totalorder %s12, 1
    %p67 = por %p65, %p66
    %p68 = scmp.ne.s32.totalorder %s60, %s63
    %p69 = scmp.eq.s32.totalorder %s12, 0
    %p70 = por %p68, %p69
    %p71 = scmp.ne.s32.totalorder %s60, %s63
    %p72 = scmp.eq.s32.totalorder %s17, 1
    %p73 = por %p71, %p72
    %p74 = scmp.ne.s32.totalorder %s63, %s64
    %p75 = scmp.eq.s32.totalorder %s17, 0
    %p76 = por %p74, %p75
    %p77 = scmp.ne.s32.totalorder %s63, %s64
    %p78 = scmp.eq.s32.totalorder %s18, 1
    %p79 = por %p77, %p78
    %p81 = scmp.ne.s32.totalorder %s64, %s80
    %p82 = scmp.eq.s32.totalorder %s18, 0
    %p83 = por %p81, %p82
    %s84 = ssub.s32 %s19, %s31
    %p85 = scmp.eq.s32.totalorder %s84, 0
    %s87 = sadd.s32 %s86, 1
    %s88 = scalar_select %p85, %s86, %s87
    %p91 = pneg %p85
    %p92 = scmp.eq.s32.totalorder %s12, 1
    %p93 = por %p91, %p92
    %p94 = scmp.ne.s32.totalorder %s86, %s89
    %p95 = scmp.eq.s32.totalorder %s12, 0
    %p96 = por %p94, %p95
    %p97 = scmp.ne.s32.totalorder %s86, %s89
    %p98 = scmp.eq.s32.totalorder %s17, 1
    %p99 = por %p97, %p98
    %p100 = scmp.ne.s32.totalorder %s89, %s90
    %p101 = scmp.eq.s32.totalorder %s17, 0
    %p102 = por %p100, %p101
    %p103 = scmp.ne.s32.totalorder %s89, %s90
    %p104 = scmp.eq.s32.totalorder %s18, 1
    %p105 = por %p103, %p104
    %p107 = scmp.ne.s32.totalorder %s90, %s106
    %p108 = scmp.eq.s32.totalorder %s18, 0
    %p109 = por %p107, %p108
    %s110 = ssub.s32 %s19, %s31
    %p111 = scmp.eq.s32.totalorder %s110, 0
    %s113 = sadd.s32 %s112, 1
    %s114 = scalar_select %p111, %s112, %s113
    %p117 = pneg %p111
    %p118 = scmp.eq.s32.totalorder %s12, 1
    %p119 = por %p117, %p118
    %p120 = scmp.ne.s32.totalorder %s112, %s115
    %p121 = scmp.eq.s32.totalorder %s12, 0
    %p122 = por %p120, %p121
    %p123 = scmp.ne.s32.totalorder %s112, %s115
    %p124 = scmp.eq.s32.totalorder %s17, 1
    %p125 = por %p123, %p124
    %p126 = scmp.ne.s32.totalorder %s115, %s116
    %p127 = scmp.eq.s32.totalorder %s17, 0
    %p128 = por %p126, %p127
    %p129 = scmp.ne.s32.totalorder %s115, %s116
    %p130 = scmp.eq.s32.totalorder %s18, 1
    %p131 = por %p129, %p130
    %p133 = scmp.ne.s32.totalorder %s116, %s132
    %p134 = scmp.eq.s32.totalorder %s18, 0
    %p135 = por %p133, %p134
    %s136 = ssub.s32 %s20, %s27
    %p137 = scmp.eq.s32.totalorder %s136, 0
    %s139 = sadd.s32 %s138, 1
    %s140 = scalar_select %p137, %s138, %s139
    %p143 = pneg %p137
    %p144 = scmp.eq.s32.totalorder %s12, 1
    %p145 = por %p143, %p144
    %p146 = scmp.ne.s32.totalorder %s138, %s141
    %p147 = scmp.eq.s32.totalorder %s12, 0
    %p148 = por %p146, %p147
    %p149 = scmp.ne.s32.totalorder %s138, %s141
    %p150 = scmp.eq.s32.totalorder %s17, 1
    %p151 = por %p149, %p150
    %p152 = scmp.ne.s32.totalorder %s141, %s142
    %p153 = scmp.eq.s32.totalorder %s17, 0
    %p154 = por %p152, %p153
    %p155 = scmp.ne.s32.totalorder %s141, %s142
    %p156 = scmp.eq.s32.totalorder %s18, 1
    %p157 = por %p155, %p156
    %p159 = scmp.ne.s32.totalorder %s142, %s158
    %p160 = scmp.eq.s32.totalorder %s18, 0
    %p161 = por %p159, %p160
    %s162 = ssub.s32 %s20, %s27
    %p163 = scmp.eq.s32.totalorder %s162, 0
    %s165 = sadd.s32 %s164, 1
    %s166 = scalar_select %p163, %s164, %s165
    %p169 = pneg %p163
    %p170 = scmp.eq.s32.totalorder %s12, 1
    %p171 = por %p169, %p170
    %p172 = scmp.ne.s32.totalorder %s164, %s167
    %p173 = scmp.eq.s32.totalorder %s12, 0
    %p174 = por %p172, %p173
    %p175 = scmp.ne.s32.totalorder %s164, %s167
    %p176 = scmp.eq.s32.totalorder %s17, 1
    %p177 = por %p175, %p176
    %p178 = scmp.ne.s32.totalorder %s167, %s168
    %p179 = scmp.eq.s32.totalorder %s17, 0
    %p180 = por %p178, %p179
    %p181 = scmp.ne.s32.totalorder %s167, %s168
    %p182 = scmp.eq.s32.totalorder %s18, 1
    %p183 = por %p181, %p182
    %p185 = scmp.ne.s32.totalorder %s168, %s184
    %p186 = scmp.eq.s32.totalorder %s18, 0
    %p187 = por %p185, %p186
    %s188 = ssub.s32 %s19, %s31
    %s189 = ssub.s32 %s20, %s27
    %s190 = sor.u32 %s188, %s189
    %p191 = scmp.eq.s32.totalorder %s190, 0
    %s193 = sadd.s32 %s192, 1
    %s194 = scalar_select %p191, %s192, %s193
    %p197 = pneg %p191
    %p198 = scmp.eq.s32.totalorder %s12, 1
    %p199 = por %p197, %p198
    %p200 = scmp.ne.s32.totalorder %s192, %s195
    %p201 = scmp.eq.s32.totalorder %s12, 0
    %p202 = por %p200, %p201
    %p203 = scmp.ne.s32.totalorder %s192, %s195
    %p204 = scmp.eq.s32.totalorder %s17, 1
    %p205 = por %p203, %p204
    %p206 = scmp.ne.s32.totalorder %s195, %s196
    %p207 = scmp.eq.s32.totalorder %s17, 0
    %p208 = por %p206, %p207
    %p209 = scmp.ne.s32.totalorder %s195, %s196
    %p210 = scmp.eq.s32.totalorder %s18, 1
    %p211 = por %p209, %p210
    %p213 = scmp.ne.s32.totalorder %s196, %s212
    %p214 = scmp.eq.s32.totalorder %s18, 0
    %p215 = por %p213, %p214
    %p216 = scmp.le.s32.totalorder 1, %s12
    %p217 = scmp.lt.s32.totalorder %s12, 3
    %p218 = pnand %p216, %p217
    %p219 = pneg %p218
    // Predicated region
    $region9: #{downsample_forward.1} parent=5 // pred_check
      _
    $region10: #{downsample_forward.1} parent=5 // pred_check_branch
      %221 = sbr.rel (%p218) target = $region12
    $region11: #{downsample_forward.1} parent=5 // pred_region
      %s222 = ssub.s32 %s12, 1
      // Predicated region
      $region13: #{downsample_forward.1} parent=11 // pred_check
        %p223 = pneg %p154
      $region14: #{downsample_forward.1} parent=11 // pred_check_branch
        %225 = sbr.rel (%p223) target = $region16
      $region15: #{downsample_forward.1} parent=11 // pred_region
        %p226 = scmp.lt.s32.totalorder %s22, 0
        %s227 = scalar_select %p226, %s22, 0
        %s228 = smul.addr %s227, 8
        %s229 = scalar_lea.vmem %s4, %s228
      $region16: #{downsample_forward.1} parent=11 // pred_fallthru
        _
      // Predicated region
      $region17: #{downsample_forward.1} parent=11 // pred_check
        %p230 = pneg %p180
      $region18: #{downsample_forward.1} parent=11 // pred_check_branch
        %232 = sbr.rel (%p230) target = $region20
      $region19: #{downsample_forward.1} parent=11 // pred_region
        %p233 = scmp.lt.s32.totalorder %s22, 0
        %s234 = scalar_select %p233, %s22, 0
        %s235 = scalar_lea.vmem %s5, %s234
      $region20: #{downsample_forward.1} parent=11 // pred_fallthru
        _
    $region12: #{downsample_forward.1} parent=5 // pred_fallthru
      _
    %p236 = scmp.lt.s32.totalorder %s12, 2
    // Predicated region
    $region21: #{downsample_forward.1} parent=5 // pred_check
      %p237 = pneg %p236
    $region22: #{downsample_forward.1} parent=5 // pred_check_branch
      %239 = sbr.rel (%p237) target = $region24
    $region23: #{downsample_forward.1} parent=5 // pred_region
      // Predicated region
      $region25: #{downsample_forward.1} parent=23 // pred_check
        %p240 = pneg %p44
      $region26: #{downsample_forward.1} parent=23 // pred_check_branch
        %242 = sbr.rel (%p240) target = $region28
      $region27: #{downsample_forward.1} parent=23 // pred_region
        %p243 = scmp.lt.s32.totalorder %s19, 1
        %s244 = scalar_select %p243, %s19, 1
        %s245 = smul.addr %s244, 18
        %s246 = smul.addr %s245, 8
        %s247 = scalar_lea.vmem %s0, %s246
      $region28: #{downsample_forward.1} parent=23 // pred_fallthru
        _
      // Predicated region
      $region29: #{downsample_forward.1} parent=23 // pred_check
        %p248 = pneg %p70
      $region30: #{downsample_forward.1} parent=23 // pred_check_branch
        %250 = sbr.rel (%p248) target = $region32
      $region31: #{downsample_forward.1} parent=23 // pred_region
        %p251 = scmp.lt.s32.totalorder %s19, 1
        %s252 = scalar_select %p251, %s19, 1
        %s253 = smul.addr %s252, 9
        %s254 = smul.addr %s253, 8
        %s255 = scalar_lea.vmem %s1, %s254
      $region32: #{downsample_forward.1} parent=23 // pred_fallthru
        _
      // Predicated region
      $region33: #{downsample_forward.1} parent=23 // pred_check
        %p256 = pneg %p96
      $region34: #{downsample_forward.1} parent=23 // pred_check_branch
        %258 = sbr.rel (%p256) target = $region36
      $region35: #{downsample_forward.1} parent=23 // pred_region
        %p259 = scmp.lt.s32.totalorder %s19, 1
        %s260 = scalar_select %p259, %s19, 1
        %s261 = smul.addr %s260, 16
        %s262 = smul.addr %s261, 8
        %s263 = scalar_lea.vmem %s2, %s262
      $region36: #{downsample_forward.1} parent=23 // pred_fallthru
        _
      // Predicated region
      $region37: #{downsample_forward.1} parent=23 // pred_check
        %p264 = pneg %p122
      $region38: #{downsample_forward.1} parent=23 // pred_check_branch
        %266 = sbr.rel (%p264) target = $region40
      $region39: #{downsample_forward.1} parent=23 // pred_region
        %p267 = scmp.lt.s32.totalorder %s19, 1
        %s268 = scalar_select %p267, %s19, 1
        %s269 = smul.addr %s268, 8
        %s270 = smul.addr %s269, 8
        %s271 = scalar_lea.vmem %s3, %s270
      $region40: #{downsample_forward.1} parent=23 // pred_fallthru
        _
    $region24: #{downsample_forward.1} parent=5 // pred_fallthru
      _
    %p272 = scmp.le.s32.totalorder 1, %s12
    %p273 = scmp.lt.s32.totalorder %s12, 3
    %p274 = pnand %p272, %p273
    %p275 = pneg %p274
    // Predicated region
    $region41: #{downsample_forward.1} parent=5 // pred_check
      _
    $region42: #{downsample_forward.1} parent=5 // pred_check_branch
      %277 = sbr.rel (%p274) target = $region44
    $region43: #{downsample_forward.1} parent=5 // pred_region
      %s278 = ssub.s32 %s12, 1
      %p279 = scmp.lt.s32.totalorder %s21, 1
      %s280 = scalar_select %p279, %s21, 1
      %s281 = smul.addr %s280, 18
      %s282 = smul.addr %s281, 8
      %s283 = scalar_lea.vmem %s0, %s282
      %p284 = pneg %p50
      %p285 = pneg %p47
      %p286 = scmp.lt.s32.totalorder %s21, 1
      %s287 = scalar_select %p286, %s21, 1
      %s288 = smul.addr %s287, 9
      %s289 = smul.addr %s288, 8
      %s290 = scalar_lea.vmem %s1, %s289
      %p291 = pneg %p76
      %p292 = pneg %p73
      %p293 = scmp.lt.s32.totalorder %s21, 1
      %s294 = scalar_select %p293, %s21, 1
      %s295 = smul.addr %s294, 16
      %s296 = smul.addr %s295, 8
      %s297 = scalar_lea.vmem %s2, %s296
      %p298 = pneg %p102
      %p299 = pneg %p99
      %p300 = scmp.lt.s32.totalorder %s21, 1
      %s301 = scalar_select %p300, %s21, 1
      %s302 = smul.addr %s301, 8
      %s303 = smul.addr %s302, 8
      %s304 = scalar_lea.vmem %s3, %s303
      %p305 = pneg %p128
      %p306 = pneg %p125
      %p307 = scmp.lt.s32.totalorder %s22, 0
      %s308 = scalar_select %p307, %s22, 0
      %s309 = smul.addr %s308, 8
      %s310 = scalar_lea.vmem %s4, %s309
      %p311 = pneg %p154
      %p312 = pneg %p151
      %p313 = scmp.lt.s32.totalorder %s22, 0
      %s314 = scalar_select %p313, %s22, 0
      %s315 = scalar_lea.vmem %s5, %s314
      %p316 = pneg %p180
      %p317 = pneg %p177
      %p318 = pneg %p208
      %p319 = pneg %p205
      %p320 = scmp.lt.s32.totalorder %s21, 1
      %s321 = scalar_select %p320, %s21, 1
      %p322 = scmp.lt.s32.totalorder %s22, 0
      %s323 = scalar_select %p322, %s22, 0
      %s324 = smul.addr %s321, 8
      %s325 = sadd.s32 %s323, %s324
      %s326 = smul.addr %s325, 8
      %s327 = scalar_lea.vmem %s6, %s326
      %p328 = scmp.lt.s32.totalorder %s21, 1
      %s329 = scalar_select %p328, %s21, 1
      %s330 = smul.addr %s329, 18
      %s331 = smul.addr %s330, 8
      %s332 = scalar_lea.vmem %s0, %s331
      %p333 = scmp.lt.s32.totalorder %s21, 1
      %s334 = scalar_select %p333, %s21, 1
      %s335 = smul.addr %s334, 9
      %s336 = smul.addr %s335, 8
      %s337 = scalar_lea.vmem %s1, %s336
      %p338 = scmp.lt.s32.totalorder %s21, 1
      %s339 = scalar_select %p338, %s21, 1
      %s340 = smul.addr %s339, 16
      %s341 = smul.addr %s340, 8
      %s342 = scalar_lea.vmem %s2, %s341
      %p343 = scmp.lt.s32.totalorder %s21, 1
      %s344 = scalar_select %p343, %s21, 1
      %s345 = smul.addr %s344, 8
      %s346 = smul.addr %s345, 8
      %s347 = scalar_lea.vmem %s3, %s346
      %p348 = scmp.lt.s32.totalorder %s22, 0
      %s349 = scalar_select %p348, %s22, 0
      %s350 = smul.addr %s349, 8
      %s351 = scalar_lea.vmem %s4, %s350
      %p352 = scmp.lt.s32.totalorder %s22, 0
      %s353 = scalar_select %p352, %s22, 0
      %s354 = scalar_lea.vmem %s5, %s353
      %p355 = scmp.lt.s32.totalorder %s21, 1
      %s356 = scalar_select %p355, %s21, 1
      %p357 = scmp.lt.s32.totalorder %s22, 0
      %s358 = scalar_select %p357, %s22, 0
      %s359 = smul.addr %s356, 8
      %s360 = sadd.s32 %s358, %s359
      %s361 = smul.addr %s360, 8
      %s362 = scalar_lea.vmem %s6, %s361
      %v363 = vld [vmem:[%s332] sm:$0xff]
      %v364 = vld [vmem:[%s332 + $0x10] sm:$0xff]
      %v365 = vld [vmem:[%s332 + $0x20] sm:$0xff]
      %v366 = vld [vmem:[%s332 + $0x30] sm:$0xff]
      %v367 = vld [vmem:[%s332 + $0x40] sm:$0xff]
      %v368 = vld [vmem:[%s332 + $0x50] sm:$0xff]
      %v369 = vld [vmem:[%s332 + $0x60] sm:$0xff]
      %v370 = vld [vmem:[%s332 + $0x70] sm:$0xff]
      %v371 = vld [vmem:[%s351] sm:$0xff]
      %v372 = vld [vmem:[%s351 + $0x8] sm:$0xff]
      %v373 = vld [vmem:[%s351 + $0x10] sm:$0xff]
      %v374 = vld [vmem:[%s351 + $0x18] sm:$0xff]
      %v375 = vld [vmem:[%s351 + $0x20] sm:$0xff]
      %v376 = vld [vmem:[%s351 + $0x28] sm:$0xff]
      %v377 = vld [vmem:[%s351 + $0x30] sm:$0xff]
      %v378 = vld [vmem:[%s351 + $0x38] sm:$0xff]
      %v379 = vld [vmem:[%s351 + $0x40] sm:$0xff]
      %v380 = vld [vmem:[%s351 + $0x48] sm:$0xff]
      %v381 = vld [vmem:[%s351 + $0x50] sm:$0xff]
      %v382 = vld [vmem:[%s351 + $0x58] sm:$0xff]
      %v383 = vld [vmem:[%s351 + $0x60] sm:$0xff]
      %v384 = vld [vmem:[%s351 + $0x68] sm:$0xff]
      %v385 = vld [vmem:[%s351 + $0x70] sm:$0xff]
      %v386 = vld [vmem:[%s351 + $0x78] sm:$0xff]
      %v387 = vld [vmem:[%s337] sm:$0xff]
      %v388 = vld [vmem:[%s337 + $0x8] sm:$0xff]
      %v389 = vld [vmem:[%s337 + $0x10] sm:$0xff]
      %v390 = vld [vmem:[%s337 + $0x18] sm:$0xff]
      %v391 = vld [vmem:[%s337 + $0x20] sm:$0xff]
      %v392 = vld [vmem:[%s337 + $0x28] sm:$0xff]
      %v393 = vld [vmem:[%s337 + $0x30] sm:$0xff]
      %v394 = vld [vmem:[%s337 + $0x38] sm:$0xff]
      %s395 = scalar_lea.vmem %s351, 128
      %v396 = vld [vmem:[%s395] sm:$0xff]
      %v397 = vld [vmem:[%s395 + $0x8] sm:$0xff]
      %v398 = vld [vmem:[%s395 + $0x10] sm:$0xff]
      %v399 = vld [vmem:[%s395 + $0x18] sm:$0xff]
      %v400 = vld [vmem:[%s395 + $0x20] sm:$0xff]
      %v401 = vld [vmem:[%s395 + $0x28] sm:$0xff]
      %v402 = vld [vmem:[%s395 + $0x30] sm:$0xff]
      %v403 = vld [vmem:[%s395 + $0x38] sm:$0xff]
      %v404 = vld [vmem:[%s395 + $0x40] sm:$0xff]
      %v405 = vld [vmem:[%s395 + $0x48] sm:$0xff]
      %v406 = vld [vmem:[%s395 + $0x50] sm:$0xff]
      %v407 = vld [vmem:[%s395 + $0x58] sm:$0xff]
      %v408 = vld [vmem:[%s395 + $0x60] sm:$0xff]
      %v409 = vld [vmem:[%s395 + $0x68] sm:$0xff]
      %v410 = vld [vmem:[%s395 + $0x70] sm:$0xff]
      %v411 = vld [vmem:[%s395 + $0x78] sm:$0xff]
      %412 = vmatprep.subr.mxu0 0.0
      %413 = vmatpush1.msra.mxu0 %v411
      %414 = vmatprep.subr.mxu0 0.0
      %415 = vmatpush1.msra.mxu0 %v410
      %416 = vmatprep.subr.mxu0 0.0
      %417 = vmatpush1.msra.mxu0 %v409
      %418 = vmatprep.subr.mxu0 0.0
      %419 = vmatpush1.msra.mxu0 %v408
      %420 = vmatprep.subr.mxu0 0.0
      %421 = vmatpush1.msra.mxu0 %v407
      %422 = vmatprep.subr.mxu0 0.0
      %423 = vmatpush1.msra.mxu0 %v406
      %424 = vmatprep.subr.mxu0 0.0
      %425 = vmatpush1.msra.mxu0 %v405
      %426 = vmatprep.subr.mxu0 0.0
      %427 = vmatpush1.msra.mxu0 %v404
      %428 = vmatprep.subr.mxu0 0.0
      %429 = vmatpush1.msra.mxu0 %v403
      %430 = vmatprep.subr.mxu0 0.0
      %431 = vmatpush1.msra.mxu0 %v402
      %432 = vmatprep.subr.mxu0 0.0
      %433 = vmatpush1.msra.mxu0 %v401
      %434 = vmatprep.subr.mxu0 0.0
      %435 = vmatpush1.msra.mxu0 %v400
      %436 = vmatprep.subr.mxu0 0.0
      %437 = vmatpush1.msra.mxu0 %v399
      %438 = vmatprep.subr.mxu0 0.0
      %439 = vmatpush1.msra.mxu0 %v398
      %440 = vmatprep.subr.mxu0 0.0
      %441 = vmatpush1.msra.mxu0 %v397
      %442 = vmatprep.subr.mxu0 0.0
      %443 = vmatpush1.msra.mxu0 %v396
      %444 = vmatprep.subr.mxu0 0.0
      %445 = vmatpush2.msra.mxu0 0.0
      %446 = vmatprep.subr.mxu0 0.0
      %447 = vmatpush2.msra.mxu0 0.0
      %448 = vmatprep.subr.mxu0 0.0
      %449 = vmatpush2.msra.mxu0 0.0
      %450 = vmatprep.subr.mxu0 0.0
      %451 = vmatpush2.msra.mxu0 0.0
      %452 = vmatprep.subr.mxu0 0.0
      %453 = vmatpush2.msra.mxu0 0.0
      %454 = vmatprep.subr.mxu0 0.0
      %455 = vmatpush2.msra.mxu0 0.0
      %456 = vmatprep.subr.mxu0 0.0
      %457 = vmatpush2.msra.mxu0 0.0
      %458 = vmatprep.subr.mxu0 0.0
      %459 = vmatpush2.msra.mxu0 0.0
      %460 = vmatprep.subr.mxu0 0.0
      %461 = vmatpush2.msra.mxu0 0.0
      %462 = vmatprep.subr.mxu0 0.0
      %463 = vmatpush2.msra.mxu0 0.0
      %464 = vmatprep.subr.mxu0 0.0
      %465 = vmatpush2.msra.mxu0 0.0
      %466 = vmatprep.subr.mxu0 0.0
      %467 = vmatpush2.msra.mxu0 0.0
      %468 = vmatprep.subr.mxu0 0.0
      %469 = vmatpush2.msra.mxu0 0.0
      %470 = vmatprep.subr.mxu0 0.0
      %471 = vmatpush2.msra.mxu0 0.0
      %472 = vmatprep.subr.mxu0 0.0
      %473 = vmatpush2.msra.mxu0 0.0
      %474 = vmatprep.subr.mxu0 0.0
      %475 = vmatpush2.msra.mxu0 0.0
      %476 = vmatprep.mubr.f32.mxu0 0.0
      %477 = vmatmul.mubr.f32.gmra.mxu0 %v387
      %v478 = vpop.f32.mrf.mxu0
      %v479 = vadd.f32 0.0, %v478
      %v480 = vpop.f32.mrf.mxu0
      %481 = vmatprep.mubr.f32.mxu0 0.0
      %482 = vmatmul.mubr.f32.gmra.mxu0 %v388
      %v483 = vpop.f32.mrf.mxu0
      %v484 = vadd.f32 0.0, %v483
      %v485 = vpop.f32.mrf.mxu0
      %486 = vmatprep.mubr.f32.mxu0 0.0
      %487 = vmatmul.mubr.f32.gmra.mxu0 %v389
      %v488 = vpop.f32.mrf.mxu0
      %v489 = vadd.f32 0.0, %v488
      %v490 = vpop.f32.mrf.mxu0
      %491 = vmatprep.mubr.f32.mxu0 0.0
      %492 = vmatmul.mubr.f32.gmra.mxu0 %v390
      %v493 = vpop.f32.mrf.mxu0
      %v494 = vadd.f32 0.0, %v493
      %v495 = vpop.f32.mrf.mxu0
      %496 = vmatprep.mubr.f32.mxu0 0.0
      %497 = vmatmul.mubr.f32.gmra.mxu0 %v391
      %v498 = vpop.f32.mrf.mxu0
      %v499 = vadd.f32 0.0, %v498
      %v500 = vpop.f32.mrf.mxu0
      %501 = vmatprep.mubr.f32.mxu0 0.0
      %502 = vmatmul.mubr.f32.gmra.mxu0 %v392
      %v503 = vpop.f32.mrf.mxu0
      %v504 = vadd.f32 0.0, %v503
      %v505 = vpop.f32.mrf.mxu0
      %506 = vmatprep.mubr.f32.mxu0 0.0
      %507 = vmatmul.mubr.f32.gmra.mxu0 %v393
      %v508 = vpop.f32.mrf.mxu0
      %v509 = vadd.f32 0.0, %v508
      %v510 = vpop.f32.mrf.mxu0
      %511 = vmatprep.mubr.f32.mxu0 0.0
      %512 = vmatmul.mubr.f32.gmra.mxu0 %v394
      %v513 = vpop.f32.mrf.mxu0
      %v514 = vadd.f32 0.0, %v513
      %v515 = vpop.f32.mrf.mxu0
      %516 = vdwg.mxu0
      %517 = vmatprep.subr.mxu0 0.0
      %518 = vmatpush1.msra.mxu0 %v386
      %519 = vmatprep.subr.mxu0 0.0
      %520 = vmatpush1.msra.mxu0 %v385
      %521 = vmatprep.subr.mxu0 0.0
      %522 = vmatpush1.msra.mxu0 %v384
      %523 = vmatprep.subr.mxu0 0.0
      %524 = vmatpush1.msra.mxu0 %v383
      %525 = vmatprep.subr.mxu0 0.0
      %526 = vmatpush1.msra.mxu0 %v382
      %527 = vmatprep.subr.mxu0 0.0
      %528 = vmatpush1.msra.mxu0 %v381
      %529 = vmatprep.subr.mxu0 0.0
      %530 = vmatpush1.msra.mxu0 %v380
      %531 = vmatprep.subr.mxu0 0.0
      %532 = vmatpush1.msra.mxu0 %v379
      %533 = vmatprep.subr.mxu0 0.0
      %534 = vmatpush1.msra.mxu0 %v378
      %535 = vmatprep.subr.mxu0 0.0
      %536 = vmatpush1.msra.mxu0 %v377
      %537 = vmatprep.subr.mxu0 0.0
      %538 = vmatpush1.msra.mxu0 %v376
      %539 = vmatprep.subr.mxu0 0.0
      %540 = vmatpush1.msra.mxu0 %v375
      %541 = vmatprep.subr.mxu0 0.0
      %542 = vmatpush1.msra.mxu0 %v374
      %543 = vmatprep.subr.mxu0 0.0
      %544 = vmatpush1.msra.mxu0 %v373
      %545 = vmatprep.subr.mxu0 0.0
      %546 = vmatpush1.msra.mxu0 %v372
      %547 = vmatprep.subr.mxu0 0.0
      %548 = vmatpush1.msra.mxu0 %v371
      %549 = vmatprep.subr.mxu0 0.0
      %550 = vmatpush2.msra.mxu0 0.0
      %551 = vmatprep.subr.mxu0 0.0
      %552 = vmatpush2.msra.mxu0 0.0
      %553 = vmatprep.subr.mxu0 0.0
      %554 = vmatpush2.msra.mxu0 0.0
      %555 = vmatprep.subr.mxu0 0.0
      %556 = vmatpush2.msra.mxu0 0.0
      %557 = vmatprep.subr.mxu0 0.0
      %558 = vmatpush2.msra.mxu0 0.0
      %559 = vmatprep.subr.mxu0 0.0
      %560 = vmatpush2.msra.mxu0 0.0
      %561 = vmatprep.subr.mxu0 0.0
      %562 = vmatpush2.msra.mxu0 0.0
      %563 = vmatprep.subr.mxu0 0.0
      %564 = vmatpush2.msra.mxu0 0.0
      %565 = vmatprep.subr.mxu0 0.0
      %566 = vmatpush2.msra.mxu0 0.0
      %567 = vmatprep.subr.mxu0 0.0
      %568 = vmatpush2.msra.mxu0 0.0
      %569 = vmatprep.subr.mxu0 0.0
      %570 = vmatpush2.msra.mxu0 0.0
      %571 = vmatprep.subr.mxu0 0.0
      %572 = vmatpush2.msra.mxu0 0.0
      %573 = vmatprep.subr.mxu0 0.0
      %574 = vmatpush2.msra.mxu0 0.0
      %575 = vmatprep.subr.mxu0 0.0
      %576 = vmatpush2.msra.mxu0 0.0
      %577 = vmatprep.subr.mxu0 0.0
      %578 = vmatpush2.msra.mxu0 0.0
      %579 = vmatprep.subr.mxu0 0.0
      %580 = vmatpush2.msra.mxu0 0.0
      %581 = vmatprep.mubr.f32.mxu0 0.0
      %582 = vmatmul.mubr.f32.gmra.mxu0 %v363
      %v583 = vpop.f32.mrf.mxu0
      %v584 = vadd.f32 %v479, %v583
      %v585 = vpop.f32.mrf.mxu0
      %586 = vmatprep.mubr.f32.mxu0 0.0
      %587 = vmatmul.mubr.f32.gmra.mxu0 %v364
      %v588 = vpop.f32.mrf.mxu0
      %v589 = vadd.f32 %v484, %v588
      %v590 = vpop.f32.mrf.mxu0
      %591 = vmatprep.mubr.f32.mxu0 0.0
      %592 = vmatmul.mubr.f32.gmra.mxu0 %v365
      %v593 = vpop.f32.mrf.mxu0
      %v594 = vadd.f32 %v489, %v593
      %v595 = vpop.f32.mrf.mxu0
      %596 = vmatprep.mubr.f32.mxu0 0.0
      %597 = vmatmul.mubr.f32.gmra.mxu0 %v366
      %v598 = vpop.f32.mrf.mxu0
      %v599 = vadd.f32 %v494, %v598
      %v600 = vpop.f32.mrf.mxu0
      %601 = vmatprep.mubr.f32.mxu0 0.0
      %602 = vmatmul.mubr.f32.gmra.mxu0 %v367
      %v603 = vpop.f32.mrf.mxu0
      %v604 = vadd.f32 %v499, %v603
      %v605 = vpop.f32.mrf.mxu0
      %606 = vmatprep.mubr.f32.mxu0 0.0
      %607 = vmatmul.mubr.f32.gmra.mxu0 %v368
      %v608 = vpop.f32.mrf.mxu0
      %v609 = vadd.f32 %v504, %v608
      %v610 = vpop.f32.mrf.mxu0
      %611 = vmatprep.mubr.f32.mxu0 0.0
      %612 = vmatmul.mubr.f32.gmra.mxu0 %v369
      %v613 = vpop.f32.mrf.mxu0
      %v614 = vadd.f32 %v509, %v613
      %v615 = vpop.f32.mrf.mxu0
      %616 = vmatprep.mubr.f32.mxu0 0.0
      %617 = vmatmul.mubr.f32.gmra.mxu0 %v370
      %v618 = vpop.f32.mrf.mxu0
      %v619 = vadd.f32 %v514, %v618
      %v620 = vpop.f32.mrf.mxu0
      %621 = vdwg.mxu0
      %v622 = vld [vmem:[%s332 + $0x1] sm:$0xff]
      %v623 = vld [vmem:[%s332 + $0x11] sm:$0xff]
      %v624 = vld [vmem:[%s332 + $0x21] sm:$0xff]
      %v625 = vld [vmem:[%s332 + $0x31] sm:$0xff]
      %v626 = vld [vmem:[%s332 + $0x41] sm:$0xff]
      %v627 = vld [vmem:[%s332 + $0x51] sm:$0xff]
      %v628 = vld [vmem:[%s332 + $0x61] sm:$0xff]
      %v629 = vld [vmem:[%s332 + $0x71] sm:$0xff]
      %s630 = scalar_lea.vmem %s351, 256
      %v631 = vld [vmem:[%s630] sm:$0xff]
      %v632 = vld [vmem:[%s630 + $0x8] sm:$0xff]
      %v633 = vld [vmem:[%s630 + $0x10] sm:$0xff]
      %v634 = vld [vmem:[%s630 + $0x18] sm:$0xff]
      %v635 = vld [vmem:[%s630 + $0x20] sm:$0xff]
      %v636 = vld [vmem:[%s630 + $0x28] sm:$0xff]
      %v637 = vld [vmem:[%s630 + $0x30] sm:$0xff]
      %v638 = vld [vmem:[%s630 + $0x38] sm:$0xff]
      %v639 = vld [vmem:[%s630 + $0x40] sm:$0xff]
      %v640 = vld [vmem:[%s630 + $0x48] sm:$0xff]
      %v641 = vld [vmem:[%s630 + $0x50] sm:$0xff]
      %v642 = vld [vmem:[%s630 + $0x58] sm:$0xff]
      %v643 = vld [vmem:[%s630 + $0x60] sm:$0xff]
      %v644 = vld [vmem:[%s630 + $0x68] sm:$0xff]
      %v645 = vld [vmem:[%s630 + $0x70] sm:$0xff]
      %v646 = vld [vmem:[%s630 + $0x78] sm:$0xff]
      %647 = vmatprep.subr.mxu0 0.0
      %648 = vmatpush1.msra.mxu0 %v646
      %649 = vmatprep.subr.mxu0 0.0
      %650 = vmatpush1.msra.mxu0 %v645
      %651 = vmatprep.subr.mxu0 0.0
      %652 = vmatpush1.msra.mxu0 %v644
      %653 = vmatprep.subr.mxu0 0.0
      %654 = vmatpush1.msra.mxu0 %v643
      %655 = vmatprep.subr.mxu0 0.0
      %656 = vmatpush1.msra.mxu0 %v642
      %657 = vmatprep.subr.mxu0 0.0
      %658 = vmatpush1.msra.mxu0 %v641
      %659 = vmatprep.subr.mxu0 0.0
      %660 = vmatpush1.msra.mxu0 %v640
      %661 = vmatprep.subr.mxu0 0.0
      %662 = vmatpush1.msra.mxu0 %v639
      %663 = vmatprep.subr.mxu0 0.0
      %664 = vmatpush1.msra.mxu0 %v638
      %665 = vmatprep.subr.mxu0 0.0
      %666 = vmatpush1.msra.mxu0 %v637
      %667 = vmatprep.subr.mxu0 0.0
      %668 = vmatpush1.msra.mxu0 %v636
      %669 = vmatprep.subr.mxu0 0.0
      %670 = vmatpush1.msra.mxu0 %v635
      %671 = vmatprep.subr.mxu0 0.0
      %672 = vmatpush1.msra.mxu0 %v634
      %673 = vmatprep.subr.mxu0 0.0
      %674 = vmatpush1.msra.mxu0 %v633
      %675 = vmatprep.subr.mxu0 0.0
      %676 = vmatpush1.msra.mxu0 %v632
      %677 = vmatprep.subr.mxu0 0.0
      %678 = vmatpush1.msra.mxu0 %v631
      %679 = vmatprep.subr.mxu0 0.0
      %680 = vmatpush2.msra.mxu0 0.0
      %681 = vmatprep.subr.mxu0 0.0
      %682 = vmatpush2.msra.mxu0 0.0
      %683 = vmatprep.subr.mxu0 0.0
      %684 = vmatpush2.msra.mxu0 0.0
      %685 = vmatprep.subr.mxu0 0.0
      %686 = vmatpush2.msra.mxu0 0.0
      %687 = vmatprep.subr.mxu0 0.0
      %688 = vmatpush2.msra.mxu0 0.0
      %689 = vmatprep.subr.mxu0 0.0
      %690 = vmatpush2.msra.mxu0 0.0
      %691 = vmatprep.subr.mxu0 0.0
      %692 = vmatpush2.msra.mxu0 0.0
      %693 = vmatprep.subr.mxu0 0.0
      %694 = vmatpush2.msra.mxu0 0.0
      %695 = vmatprep.subr.mxu0 0.0
      %696 = vmatpush2.msra.mxu0 0.0
      %697 = vmatprep.subr.mxu0 0.0
      %698 = vmatpush2.msra.mxu0 0.0
      %699 = vmatprep.subr.mxu0 0.0
      %700 = vmatpush2.msra.mxu0 0.0
      %701 = vmatprep.subr.mxu0 0.0
      %702 = vmatpush2.msra.mxu0 0.0
      %703 = vmatprep.subr.mxu0 0.0
      %704 = vmatpush2.msra.mxu0 0.0
      %705 = vmatprep.subr.mxu0 0.0
      %706 = vmatpush2.msra.mxu0 0.0
      %707 = vmatprep.subr.mxu0 0.0
      %708 = vmatpush2.msra.mxu0 0.0
      %709 = vmatprep.subr.mxu0 0.0
      %710 = vmatpush2.msra.mxu0 0.0
      %711 = vmatprep.mubr.f32.mxu0 0.0
      %712 = vmatmul.mubr.f32.gmra.mxu0 %v622
      %v713 = vpop.f32.mrf.mxu0
      %v714 = vadd.f32 0.0, %v713
      %v715 = vpop.f32.mrf.mxu0
      %716 = vmatprep.mubr.f32.mxu0 0.0
      %717 = vmatmul.mubr.f32.gmra.mxu0 %v623
      %v718 = vpop.f32.mrf.mxu0
      %v719 = vadd.f32 0.0, %v718
      %v720 = vpop.f32.mrf.mxu0
      %721 = vmatprep.mubr.f32.mxu0 0.0
      %722 = vmatmul.mubr.f32.gmra.mxu0 %v624
      %v723 = vpop.f32.mrf.mxu0
      %v724 = vadd.f32 0.0, %v723
      %v725 = vpop.f32.mrf.mxu0
      %726 = vmatprep.mubr.f32.mxu0 0.0
      %727 = vmatmul.mubr.f32.gmra.mxu0 %v625
      %v728 = vpop.f32.mrf.mxu0
      %v729 = vadd.f32 0.0, %v728
      %v730 = vpop.f32.mrf.mxu0
      %731 = vmatprep.mubr.f32.mxu0 0.0
      %732 = vmatmul.mubr.f32.gmra.mxu0 %v626
      %v733 = vpop.f32.mrf.mxu0
      %v734 = vadd.f32 0.0, %v733
      %v735 = vpop.f32.mrf.mxu0
      %736 = vmatprep.mubr.f32.mxu0 0.0
      %737 = vmatmul.mubr.f32.gmra.mxu0 %v627
      %v738 = vpop.f32.mrf.mxu0
      %v739 = vadd.f32 0.0, %v738
      %v740 = vpop.f32.mrf.mxu0
      %741 = vmatprep.mubr.f32.mxu0 0.0
      %742 = vmatmul.mubr.f32.gmra.mxu0 %v628
      %v743 = vpop.f32.mrf.mxu0
      %v744 = vadd.f32 0.0, %v743
      %v745 = vpop.f32.mrf.mxu0
      %746 = vmatprep.mubr.f32.mxu0 0.0
      %747 = vmatmul.mubr.f32.gmra.mxu0 %v629
      %v748 = vpop.f32.mrf.mxu0
      %v749 = vadd.f32 0.0, %v748
      %v750 = vpop.f32.mrf.mxu0
      %751 = vdwg.mxu0
      %v752 = vadd.f32 %v584, %v714
      %v753 = vadd.f32 %v589, %v719
      %v754 = vadd.f32 %v594, %v724
      %v755 = vadd.f32 %v599, %v729
      %v756 = vadd.f32 %v604, %v734
      %v757 = vadd.f32 %v609, %v739
      %v758 = vadd.f32 %v614, %v744
      %v759 = vadd.f32 %v619, %v749
      %v760 = vld [vmem:[%s342] sm:$0xff]
      %v761 = vld [vmem:[%s342 + $0x10] sm:$0xff]
      %v762 = vld [vmem:[%s342 + $0x20] sm:$0xff]
      %v763 = vld [vmem:[%s342 + $0x30] sm:$0xff]
      %v764 = vld [vmem:[%s342 + $0x40] sm:$0xff]
      %v765 = vld [vmem:[%s342 + $0x50] sm:$0xff]
      %v766 = vld [vmem:[%s342 + $0x60] sm:$0xff]
      %v767 = vld [vmem:[%s342 + $0x70] sm:$0xff]
      %s768 = scalar_lea.vmem %s351, 384
      %v769 = vld [vmem:[%s768] sm:$0xff]
      %v770 = vld [vmem:[%s768 + $0x8] sm:$0xff]
      %v771 = vld [vmem:[%s768 + $0x10] sm:$0xff]
      %v772 = vld [vmem:[%s768 + $0x18] sm:$0xff]
      %v773 = vld [vmem:[%s768 + $0x20] sm:$0xff]
      %v774 = vld [vmem:[%s768 + $0x28] sm:$0xff]
      %v775 = vld [vmem:[%s768 + $0x30] sm:$0xff]
      %v776 = vld [vmem:[%s768 + $0x38] sm:$0xff]
      %v777 = vld [vmem:[%s768 + $0x40] sm:$0xff]
      %v778 = vld [vmem:[%s768 + $0x48] sm:$0xff]
      %v779 = vld [vmem:[%s768 + $0x50] sm:$0xff]
      %v780 = vld [vmem:[%s768 + $0x58] sm:$0xff]
      %v781 = vld [vmem:[%s768 + $0x60] sm:$0xff]
      %v782 = vld [vmem:[%s768 + $0x68] sm:$0xff]
      %v783 = vld [vmem:[%s768 + $0x70] sm:$0xff]
      %v784 = vld [vmem:[%s768 + $0x78] sm:$0xff]
      %785 = vmatprep.subr.mxu0 0.0
      %786 = vmatpush1.msra.mxu0 %v784
      %787 = vmatprep.subr.mxu0 0.0
      %788 = vmatpush1.msra.mxu0 %v783
      %789 = vmatprep.subr.mxu0 0.0
      %790 = vmatpush1.msra.mxu0 %v782
      %791 = vmatprep.subr.mxu0 0.0
      %792 = vmatpush1.msra.mxu0 %v781
      %793 = vmatprep.subr.mxu0 0.0
      %794 = vmatpush1.msra.mxu0 %v780
      %795 = vmatprep.subr.mxu0 0.0
      %796 = vmatpush1.msra.mxu0 %v779
      %797 = vmatprep.subr.mxu0 0.0
      %798 = vmatpush1.msra.mxu0 %v778
      %799 = vmatprep.subr.mxu0 0.0
      %800 = vmatpush1.msra.mxu0 %v777
      %801 = vmatprep.subr.mxu0 0.0
      %802 = vmatpush1.msra.mxu0 %v776
      %803 = vmatprep.subr.mxu0 0.0
      %804 = vmatpush1.msra.mxu0 %v775
      %805 = vmatprep.subr.mxu0 0.0
      %806 = vmatpush1.msra.mxu0 %v774
      %807 = vmatprep.subr.mxu0 0.0
      %808 = vmatpush1.msra.mxu0 %v773
      %809 = vmatprep.subr.mxu0 0.0
      %810 = vmatpush1.msra.mxu0 %v772
      %811 = vmatprep.subr.mxu0 0.0
      %812 = vmatpush1.msra.mxu0 %v771
      %813 = vmatprep.subr.mxu0 0.0
      %814 = vmatpush1.msra.mxu0 %v770
      %815 = vmatprep.subr.mxu0 0.0
      %816 = vmatpush1.msra.mxu0 %v769
      %817 = vmatprep.subr.mxu0 0.0
      %818 = vmatpush2.msra.mxu0 0.0
      %819 = vmatprep.subr.mxu0 0.0
      %820 = vmatpush2.msra.mxu0 0.0
      %821 = vmatprep.subr.mxu0 0.0
      %822 = vmatpush2.msra.mxu0 0.0
      %823 = vmatprep.subr.mxu0 0.0
      %824 = vmatpush2.msra.mxu0 0.0
      %825 = vmatprep.subr.mxu0 0.0
      %826 = vmatpush2.msra.mxu0 0.0
      %827 = vmatprep.subr.mxu0 0.0
      %828 = vmatpush2.msra.mxu0 0.0
      %829 = vmatprep.subr.mxu0 0.0
      %830 = vmatpush2.msra.mxu0 0.0
      %831 = vmatprep.subr.mxu0 0.0
      %832 = vmatpush2.msra.mxu0 0.0
      %833 = vmatprep.subr.mxu0 0.0
      %834 = vmatpush2.msra.mxu0 0.0
      %835 = vmatprep.subr.mxu0 0.0
      %836 = vmatpush2.msra.mxu0 0.0
      %837 = vmatprep.subr.mxu0 0.0
      %838 = vmatpush2.msra.mxu0 0.0
      %839 = vmatprep.subr.mxu0 0.0
      %840 = vmatpush2.msra.mxu0 0.0
      %841 = vmatprep.subr.mxu0 0.0
      %842 = vmatpush2.msra.mxu0 0.0
      %843 = vmatprep.subr.mxu0 0.0
      %844 = vmatpush2.msra.mxu0 0.0
      %845 = vmatprep.subr.mxu0 0.0
      %846 = vmatpush2.msra.mxu0 0.0
      %847 = vmatprep.subr.mxu0 0.0
      %848 = vmatpush2.msra.mxu0 0.0
      %849 = vmatprep.mubr.f32.mxu0 0.0
      %850 = vmatmul.mubr.f32.gmra.mxu0 %v760
      %v851 = vpop.f32.mrf.mxu0
      %v852 = vadd.f32 0.0, %v851
      %v853 = vpop.f32.mrf.mxu0
      %854 = vmatprep.mubr.f32.mxu0 0.0
      %855 = vmatmul.mubr.f32.gmra.mxu0 %v761
      %v856 = vpop.f32.mrf.mxu0
      %v857 = vadd.f32 0.0, %v856
      %v858 = vpop.f32.mrf.mxu0
      %859 = vmatprep.mubr.f32.mxu0 0.0
      %860 = vmatmul.mubr.f32.gmra.mxu0 %v762
      %v861 = vpop.f32.mrf.mxu0
      %v862 = vadd.f32 0.0, %v861
      %v863 = vpop.f32.mrf.mxu0
      %864 = vmatprep.mubr.f32.mxu0 0.0
      %865 = vmatmul.mubr.f32.gmra.mxu0 %v763
      %v866 = vpop.f32.mrf.mxu0
      %v867 = vadd.f32 0.0, %v866
      %v868 = vpop.f32.mrf.mxu0
      %869 = vmatprep.mubr.f32.mxu0 0.0
      %870 = vmatmul.mubr.f32.gmra.mxu0 %v764
      %v871 = vpop.f32.mrf.mxu0
      %v872 = vadd.f32 0.0, %v871
      %v873 = vpop.f32.mrf.mxu0
      %874 = vmatprep.mubr.f32.mxu0 0.0
      %875 = vmatmul.mubr.f32.gmra.mxu0 %v765
      %v876 = vpop.f32.mrf.mxu0
      %v877 = vadd.f32 0.0, %v876
      %v878 = vpop.f32.mrf.mxu0
      %879 = vmatprep.mubr.f32.mxu0 0.0
      %880 = vmatmul.mubr.f32.gmra.mxu0 %v766
      %v881 = vpop.f32.mrf.mxu0
      %v882 = vadd.f32 0.0, %v881
      %v883 = vpop.f32.mrf.mxu0
      %884 = vmatprep.mubr.f32.mxu0 0.0
      %885 = vmatmul.mubr.f32.gmra.mxu0 %v767
      %v886 = vpop.f32.mrf.mxu0
      %v887 = vadd.f32 0.0, %v886
      %v888 = vpop.f32.mrf.mxu0
      %889 = vdwg.mxu0
      %v890 = vadd.f32 %v752, %v852
      %v891 = vadd.f32 %v753, %v857
      %v892 = vadd.f32 %v754, %v862
      %v893 = vadd.f32 %v755, %v867
      %v894 = vadd.f32 %v756, %v872
      %v895 = vadd.f32 %v757, %v877
      %v896 = vadd.f32 %v758, %v882
      %v897 = vadd.f32 %v759, %v887
      %v898 = vld [vmem:[%s347] sm:$0xff]
      %v899 = vld [vmem:[%s347 + $0x8] sm:$0xff]
      %v900 = vld [vmem:[%s347 + $0x10] sm:$0xff]
      %v901 = vld [vmem:[%s347 + $0x18] sm:$0xff]
      %v902 = vld [vmem:[%s347 + $0x20] sm:$0xff]
      %v903 = vld [vmem:[%s347 + $0x28] sm:$0xff]
      %v904 = vld [vmem:[%s347 + $0x30] sm:$0xff]
      %v905 = vld [vmem:[%s347 + $0x38] sm:$0xff]
      %s906 = scalar_lea.vmem %s351, 512
      %v907 = vld [vmem:[%s906] sm:$0xff]
      %v908 = vld [vmem:[%s906 + $0x8] sm:$0xff]
      %v909 = vld [vmem:[%s906 + $0x10] sm:$0xff]
      %v910 = vld [vmem:[%s906 + $0x18] sm:$0xff]
      %v911 = vld [vmem:[%s906 + $0x20] sm:$0xff]
      %v912 = vld [vmem:[%s906 + $0x28] sm:$0xff]
      %v913 = vld [vmem:[%s906 + $0x30] sm:$0xff]
      %v914 = vld [vmem:[%s906 + $0x38] sm:$0xff]
      %v915 = vld [vmem:[%s906 + $0x40] sm:$0xff]
      %v916 = vld [vmem:[%s906 + $0x48] sm:$0xff]
      %v917 = vld [vmem:[%s906 + $0x50] sm:$0xff]
      %v918 = vld [vmem:[%s906 + $0x58] sm:$0xff]
      %v919 = vld [vmem:[%s906 + $0x60] sm:$0xff]
      %v920 = vld [vmem:[%s906 + $0x68] sm:$0xff]
      %v921 = vld [vmem:[%s906 + $0x70] sm:$0xff]
      %v922 = vld [vmem:[%s906 + $0x78] sm:$0xff]
      %923 = vmatprep.subr.mxu0 0.0
      %924 = vmatpush1.msra.mxu0 %v922
      %925 = vmatprep.subr.mxu0 0.0
      %926 = vmatpush1.msra.mxu0 %v921
      %927 = vmatprep.subr.mxu0 0.0
      %928 = vmatpush1.msra.mxu0 %v920
      %929 = vmatprep.subr.mxu0 0.0
      %930 = vmatpush1.msra.mxu0 %v919
      %931 = vmatprep.subr.mxu0 0.0
      %932 = vmatpush1.msra.mxu0 %v918
      %933 = vmatprep.subr.mxu0 0.0
      %934 = vmatpush1.msra.mxu0 %v917
      %935 = vmatprep.subr.mxu0 0.0
      %936 = vmatpush1.msra.mxu0 %v916
      %937 = vmatprep.subr.mxu0 0.0
      %938 = vmatpush1.msra.mxu0 %v915
      %939 = vmatprep.subr.mxu0 0.0
      %940 = vmatpush1.msra.mxu0 %v914
      %941 = vmatprep.subr.mxu0 0.0
      %942 = vmatpush1.msra.mxu0 %v913
      %943 = vmatprep.subr.mxu0 0.0
      %944 = vmatpush1.msra.mxu0 %v912
      %945 = vmatprep.subr.mxu0 0.0
      %946 = vmatpush1.msra.mxu0 %v911
      %947 = vmatprep.subr.mxu0 0.0
      %948 = vmatpush1.msra.mxu0 %v910
      %949 = vmatprep.subr.mxu0 0.0
      %950 = vmatpush1.msra.mxu0 %v909
      %951 = vmatprep.subr.mxu0 0.0
      %952 = vmatpush1.msra.mxu0 %v908
      %953 = vmatprep.subr.mxu0 0.0
      %954 = vmatpush1.msra.mxu0 %v907
      %955 = vmatprep.subr.mxu0 0.0
      %956 = vmatpush2.msra.mxu0 0.0
      %957 = vmatprep.subr.mxu0 0.0
      %958 = vmatpush2.msra.mxu0 0.0
      %959 = vmatprep.subr.mxu0 0.0
      %960 = vmatpush2.msra.mxu0 0.0
      %961 = vmatprep.subr.mxu0 0.0
      %962 = vmatpush2.msra.mxu0 0.0
      %963 = vmatprep.subr.mxu0 0.0
      %964 = vmatpush2.msra.mxu0 0.0
      %965 = vmatprep.subr.mxu0 0.0
      %966 = vmatpush2.msra.mxu0 0.0
      %967 = vmatprep.subr.mxu0 0.0
      %968 = vmatpush2.msra.mxu0 0.0
      %969 = vmatprep.subr.mxu0 0.0
      %970 = vmatpush2.msra.mxu0 0.0
      %971 = vmatprep.subr.mxu0 0.0
      %972 = vmatpush2.msra.mxu0 0.0
      %973 = vmatprep.subr.mxu0 0.0
      %974 = vmatpush2.msra.mxu0 0.0
      %975 = vmatprep.subr.mxu0 0.0
      %976 = vmatpush2.msra.mxu0 0.0
      %977 = vmatprep.subr.mxu0 0.0
      %978 = vmatpush2.msra.mxu0 0.0
      %979 = vmatprep.subr.mxu0 0.0
      %980 = vmatpush2.msra.mxu0 0.0
      %981 = vmatprep.subr.mxu0 0.0
      %982 = vmatpush2.msra.mxu0 0.0
      %983 = vmatprep.subr.mxu0 0.0
      %984 = vmatpush2.msra.mxu0 0.0
      %985 = vmatprep.subr.mxu0 0.0
      %986 = vmatpush2.msra.mxu0 0.0
      %987 = vmatprep.mubr.f32.mxu0 0.0
      %988 = vmatmul.mubr.f32.gmra.mxu0 %v898
      %v989 = vpop.f32.mrf.mxu0
      %v990 = vadd.f32 0.0, %v989
      %v991 = vpop.f32.mrf.mxu0
      %992 = vmatprep.mubr.f32.mxu0 0.0
      %993 = vmatmul.mubr.f32.gmra.mxu0 %v899
      %v994 = vpop.f32.mrf.mxu0
      %v995 = vadd.f32 0.0, %v994
      %v996 = vpop.f32.mrf.mxu0
      %997 = vmatprep.mubr.f32.mxu0 0.0
      %998 = vmatmul.mubr.f32.gmra.mxu0 %v900
      %v999 = vpop.f32.mrf.mxu0
      %v1000 = vadd.f32 0.0, %v999
      %v1001 = vpop.f32.mrf.mxu0
      %1002 = vmatprep.mubr.f32.mxu0 0.0
      %1003 = vmatmul.mubr.f32.gmra.mxu0 %v901
      %v1004 = vpop.f32.mrf.mxu0
      %v1005 = vadd.f32 0.0, %v1004
      %v1006 = vpop.f32.mrf.mxu0
      %1007 = vmatprep.mubr.f32.mxu0 0.0
      %1008 = vmatmul.mubr.f32.gmra.mxu0 %v902
      %v1009 = vpop.f32.mrf.mxu0
      %v1010 = vadd.f32 0.0, %v1009
      %v1011 = vpop.f32.mrf.mxu0
      %1012 = vmatprep.mubr.f32.mxu0 0.0
      %1013 = vmatmul.mubr.f32.gmra.mxu0 %v903
      %v1014 = vpop.f32.mrf.mxu0
      %v1015 = vadd.f32 0.0, %v1014
      %v1016 = vpop.f32.mrf.mxu0
      %1017 = vmatprep.mubr.f32.mxu0 0.0
      %1018 = vmatmul.mubr.f32.gmra.mxu0 %v904
      %v1019 = vpop.f32.mrf.mxu0
      %v1020 = vadd.f32 0.0, %v1019
      %v1021 = vpop.f32.mrf.mxu0
      %1022 = vmatprep.mubr.f32.mxu0 0.0
      %1023 = vmatmul.mubr.f32.gmra.mxu0 %v905
      %v1024 = vpop.f32.mrf.mxu0
      %v1025 = vadd.f32 0.0, %v1024
      %v1026 = vpop.f32.mrf.mxu0
      %1027 = vdwg.mxu0
      %v1028 = vadd.f32 %v890, %v990
      %v1029 = vadd.f32 %v891, %v995
      %v1030 = vadd.f32 %v892, %v1000
      %v1031 = vadd.f32 %v893, %v1005
      %v1032 = vadd.f32 %v894, %v1010
      %v1033 = vadd.f32 %v895, %v1015
      %v1034 = vadd.f32 %v896, %v1020
      %v1035 = vadd.f32 %v897, %v1025
      %v1036 = vld [vmem:[%s342 + $0x1] sm:$0xff]
      %v1037 = vld [vmem:[%s342 + $0x11] sm:$0xff]
      %v1038 = vld [vmem:[%s342 + $0x21] sm:$0xff]
      %v1039 = vld [vmem:[%s342 + $0x31] sm:$0xff]
      %v1040 = vld [vmem:[%s342 + $0x41] sm:$0xff]
      %v1041 = vld [vmem:[%s342 + $0x51] sm:$0xff]
      %v1042 = vld [vmem:[%s342 + $0x61] sm:$0xff]
      %v1043 = vld [vmem:[%s342 + $0x71] sm:$0xff]
      %s1044 = scalar_lea.vmem %s351, 640
      %v1045 = vld [vmem:[%s1044] sm:$0xff]
      %v1046 = vld [vmem:[%s1044 + $0x8] sm:$0xff]
      %v1047 = vld [vmem:[%s1044 + $0x10] sm:$0xff]
      %v1048 = vld [vmem:[%s1044 + $0x18] sm:$0xff]
      %v1049 = vld [vmem:[%s1044 + $0x20] sm:$0xff]
      %v1050 = vld [vmem:[%s1044 + $0x28] sm:$0xff]
      %v1051 = vld [vmem:[%s1044 + $0x30] sm:$0xff]
      %v1052 = vld [vmem:[%s1044 + $0x38] sm:$0xff]
      %v1053 = vld [vmem:[%s1044 + $0x40] sm:$0xff]
      %v1054 = vld [vmem:[%s1044 + $0x48] sm:$0xff]
      %v1055 = vld [vmem:[%s1044 + $0x50] sm:$0xff]
      %v1056 = vld [vmem:[%s1044 + $0x58] sm:$0xff]
      %v1057 = vld [vmem:[%s1044 + $0x60] sm:$0xff]
      %v1058 = vld [vmem:[%s1044 + $0x68] sm:$0xff]
      %v1059 = vld [vmem:[%s1044 + $0x70] sm:$0xff]
      %v1060 = vld [vmem:[%s1044 + $0x78] sm:$0xff]
      %1061 = vmatprep.subr.mxu0 0.0
      %1062 = vmatpush1.msra.mxu0 %v1060
      %1063 = vmatprep.subr.mxu0 0.0
      %1064 = vmatpush1.msra.mxu0 %v1059
      %1065 = vmatprep.subr.mxu0 0.0
      %1066 = vmatpush1.msra.mxu0 %v1058
      %1067 = vmatprep.subr.mxu0 0.0
      %1068 = vmatpush1.msra.mxu0 %v1057
      %1069 = vmatprep.subr.mxu0 0.0
      %1070 = vmatpush1.msra.mxu0 %v1056
      %1071 = vmatprep.subr.mxu0 0.0
      %1072 = vmatpush1.msra.mxu0 %v1055
      %1073 = vmatprep.subr.mxu0 0.0
      %1074 = vmatpush1.msra.mxu0 %v1054
      %1075 = vmatprep.subr.mxu0 0.0
      %1076 = vmatpush1.msra.mxu0 %v1053
      %1077 = vmatprep.subr.mxu0 0.0
      %1078 = vmatpush1.msra.mxu0 %v1052
      %1079 = vmatprep.subr.mxu0 0.0
      %1080 = vmatpush1.msra.mxu0 %v1051
      %1081 = vmatprep.subr.mxu0 0.0
      %1082 = vmatpush1.msra.mxu0 %v1050
      %1083 = vmatprep.subr.mxu0 0.0
      %1084 = vmatpush1.msra.mxu0 %v1049
      %1085 = vmatprep.subr.mxu0 0.0
      %1086 = vmatpush1.msra.mxu0 %v1048
      %1087 = vmatprep.subr.mxu0 0.0
      %1088 = vmatpush1.msra.mxu0 %v1047
      %1089 = vmatprep.subr.mxu0 0.0
      %1090 = vmatpush1.msra.mxu0 %v1046
      %1091 = vmatprep.subr.mxu0 0.0
      %1092 = vmatpush1.msra.mxu0 %v1045
      %1093 = vmatprep.subr.mxu0 0.0
      %1094 = vmatpush2.msra.mxu0 0.0
      %1095 = vmatprep.subr.mxu0 0.0
      %1096 = vmatpush2.msra.mxu0 0.0
      %1097 = vmatprep.subr.mxu0 0.0
      %1098 = vmatpush2.msra.mxu0 0.0
      %1099 = vmatprep.subr.mxu0 0.0
      %1100 = vmatpush2.msra.mxu0 0.0
      %1101 = vmatprep.subr.mxu0 0.0
      %1102 = vmatpush2.msra.mxu0 0.0
      %1103 = vmatprep.subr.mxu0 0.0
      %1104 = vmatpush2.msra.mxu0 0.0
      %1105 = vmatprep.subr.mxu0 0.0
      %1106 = vmatpush2.msra.mxu0 0.0
      %1107 = vmatprep.subr.mxu0 0.0
      %1108 = vmatpush2.msra.mxu0 0.0
      %1109 = vmatprep.subr.mxu0 0.0
      %1110 = vmatpush2.msra.mxu0 0.0
      %1111 = vmatprep.subr.mxu0 0.0
      %1112 = vmatpush2.msra.mxu0 0.0
      %1113 = vmatprep.subr.mxu0 0.0
      %1114 = vmatpush2.msra.mxu0 0.0
      %1115 = vmatprep.subr.mxu0 0.0
      %1116 = vmatpush2.msra.mxu0 0.0
      %1117 = vmatprep.subr.mxu0 0.0
      %1118 = vmatpush2.msra.mxu0 0.0
      %1119 = vmatprep.subr.mxu0 0.0
      %1120 = vmatpush2.msra.mxu0 0.0
      %1121 = vmatprep.subr.mxu0 0.0
      %1122 = vmatpush2.msra.mxu0 0.0
      %1123 = vmatprep.subr.mxu0 0.0
      %1124 = vmatpush2.msra.mxu0 0.0
      %1125 = vmatprep.mubr.f32.mxu0 0.0
      %1126 = vmatmul.mubr.f32.gmra.mxu0 %v1036
      %v1127 = vpop.f32.mrf.mxu0
      %v1128 = vadd.f32 0.0, %v1127
      %v1129 = vpop.f32.mrf.mxu0
      %1130 = vmatprep.mubr.f32.mxu0 0.0
      %1131 = vmatmul.mubr.f32.gmra.mxu0 %v1037
      %v1132 = vpop.f32.mrf.mxu0
      %v1133 = vadd.f32 0.0, %v1132
      %v1134 = vpop.f32.mrf.mxu0
      %1135 = vmatprep.mubr.f32.mxu0 0.0
      %1136 = vmatmul.mubr.f32.gmra.mxu0 %v1038
      %v1137 = vpop.f32.mrf.mxu0
      %v1138 = vadd.f32 0.0, %v1137
      %v1139 = vpop.f32.mrf.mxu0
      %1140 = vmatprep.mubr.f32.mxu0 0.0
      %1141 = vmatmul.mubr.f32.gmra.mxu0 %v1039
      %v1142 = vpop.f32.mrf.mxu0
      %v1143 = vadd.f32 0.0, %v1142
      %v1144 = vpop.f32.mrf.mxu0
      %1145 = vmatprep.mubr.f32.mxu0 0.0
      %1146 = vmatmul.mubr.f32.gmra.mxu0 %v1040
      %v1147 = vpop.f32.mrf.mxu0
      %v1148 = vadd.f32 0.0, %v1147
      %v1149 = vpop.f32.mrf.mxu0
      %1150 = vmatprep.mubr.f32.mxu0 0.0
      %1151 = vmatmul.mubr.f32.gmra.mxu0 %v1041
      %v1152 = vpop.f32.mrf.mxu0
      %v1153 = vadd.f32 0.0, %v1152
      %v1154 = vpop.f32.mrf.mxu0
      %1155 = vmatprep.mubr.f32.mxu0 0.0
      %1156 = vmatmul.mubr.f32.gmra.mxu0 %v1042
      %v1157 = vpop.f32.mrf.mxu0
      %v1158 = vadd.f32 0.0, %v1157
      %v1159 = vpop.f32.mrf.mxu0
      %1160 = vmatprep.mubr.f32.mxu0 0.0
      %1161 = vmatmul.mubr.f32.gmra.mxu0 %v1043
      %v1162 = vpop.f32.mrf.mxu0
      %v1163 = vadd.f32 0.0, %v1162
      %v1164 = vpop.f32.mrf.mxu0
      %1165 = vdwg.mxu0
      %v1166 = vadd.f32 %v1028, %v1128
      %v1167 = vadd.f32 %v1029, %v1133
      %v1168 = vadd.f32 %v1030, %v1138
      %v1169 = vadd.f32 %v1031, %v1143
      %v1170 = vadd.f32 %v1032, %v1148
      %v1171 = vadd.f32 %v1033, %v1153
      %v1172 = vadd.f32 %v1034, %v1158
      %v1173 = vadd.f32 %v1035, %v1163
      %s1174 = scalar_lea.vmem %s332, 16
      %v1175 = vld [vmem:[%s1174] sm:$0xff]
      %v1176 = vld [vmem:[%s1174 + $0x10] sm:$0xff]
      %v1177 = vld [vmem:[%s1174 + $0x20] sm:$0xff]
      %v1178 = vld [vmem:[%s1174 + $0x30] sm:$0xff]
      %v1179 = vld [vmem:[%s1174 + $0x40] sm:$0xff]
      %v1180 = vld [vmem:[%s1174 + $0x50] sm:$0xff]
      %v1181 = vld [vmem:[%s1174 + $0x60] sm:$0xff]
      %v1182 = vld [vmem:[%s1174 + $0x70] sm:$0xff]
      %s1183 = scalar_lea.vmem %s351, 768
      %v1184 = vld [vmem:[%s1183] sm:$0xff]
      %v1185 = vld [vmem:[%s1183 + $0x8] sm:$0xff]
      %v1186 = vld [vmem:[%s1183 + $0x10] sm:$0xff]
      %v1187 = vld [vmem:[%s1183 + $0x18] sm:$0xff]
      %v1188 = vld [vmem:[%s1183 + $0x20] sm:$0xff]
      %v1189 = vld [vmem:[%s1183 + $0x28] sm:$0xff]
      %v1190 = vld [vmem:[%s1183 + $0x30] sm:$0xff]
      %v1191 = vld [vmem:[%s1183 + $0x38] sm:$0xff]
      %v1192 = vld [vmem:[%s1183 + $0x40] sm:$0xff]
      %v1193 = vld [vmem:[%s1183 + $0x48] sm:$0xff]
      %v1194 = vld [vmem:[%s1183 + $0x50] sm:$0xff]
      %v1195 = vld [vmem:[%s1183 + $0x58] sm:$0xff]
      %v1196 = vld [vmem:[%s1183 + $0x60] sm:$0xff]
      %v1197 = vld [vmem:[%s1183 + $0x68] sm:$0xff]
      %v1198 = vld [vmem:[%s1183 + $0x70] sm:$0xff]
      %v1199 = vld [vmem:[%s1183 + $0x78] sm:$0xff]
      %1200 = vmatprep.subr.mxu0 0.0
      %1201 = vmatpush1.msra.mxu0 %v1199
      %1202 = vmatprep.subr.mxu0 0.0
      %1203 = vmatpush1.msra.mxu0 %v1198
      %1204 = vmatprep.subr.mxu0 0.0
      %1205 = vmatpush1.msra.mxu0 %v1197
      %1206 = vmatprep.subr.mxu0 0.0
      %1207 = vmatpush1.msra.mxu0 %v1196
      %1208 = vmatprep.subr.mxu0 0.0
      %1209 = vmatpush1.msra.mxu0 %v1195
      %1210 = vmatprep.subr.mxu0 0.0
      %1211 = vmatpush1.msra.mxu0 %v1194
      %1212 = vmatprep.subr.mxu0 0.0
      %1213 = vmatpush1.msra.mxu0 %v1193
      %1214 = vmatprep.subr.mxu0 0.0
      %1215 = vmatpush1.msra.mxu0 %v1192
      %1216 = vmatprep.subr.mxu0 0.0
      %1217 = vmatpush1.msra.mxu0 %v1191
      %1218 = vmatprep.subr.mxu0 0.0
      %1219 = vmatpush1.msra.mxu0 %v1190
      %1220 = vmatprep.subr.mxu0 0.0
      %1221 = vmatpush1.msra.mxu0 %v1189
      %1222 = vmatprep.subr.mxu0 0.0
      %1223 = vmatpush1.msra.mxu0 %v1188
      %1224 = vmatprep.subr.mxu0 0.0
      %1225 = vmatpush1.msra.mxu0 %v1187
      %1226 = vmatprep.subr.mxu0 0.0
      %1227 = vmatpush1.msra.mxu0 %v1186
      %1228 = vmatprep.subr.mxu0 0.0
      %1229 = vmatpush1.msra.mxu0 %v1185
      %1230 = vmatprep.subr.mxu0 0.0
      %1231 = vmatpush1.msra.mxu0 %v1184
      %1232 = vmatprep.subr.mxu0 0.0
      %1233 = vmatpush2.msra.mxu0 0.0
      %1234 = vmatprep.subr.mxu0 0.0
      %1235 = vmatpush2.msra.mxu0 0.0
      %1236 = vmatprep.subr.mxu0 0.0
      %1237 = vmatpush2.msra.mxu0 0.0
      %1238 = vmatprep.subr.mxu0 0.0
      %1239 = vmatpush2.msra.mxu0 0.0
      %1240 = vmatprep.subr.mxu0 0.0
      %1241 = vmatpush2.msra.mxu0 0.0
      %1242 = vmatprep.subr.mxu0 0.0
      %1243 = vmatpush2.msra.mxu0 0.0
      %1244 = vmatprep.subr.mxu0 0.0
      %1245 = vmatpush2.msra.mxu0 0.0
      %1246 = vmatprep.subr.mxu0 0.0
      %1247 = vmatpush2.msra.mxu0 0.0
      %1248 = vmatprep.subr.mxu0 0.0
      %1249 = vmatpush2.msra.mxu0 0.0
      %1250 = vmatprep.subr.mxu0 0.0
      %1251 = vmatpush2.msra.mxu0 0.0
      %1252 = vmatprep.subr.mxu0 0.0
      %1253 = vmatpush2.msra.mxu0 0.0
      %1254 = vmatprep.subr.mxu0 0.0
      %1255 = vmatpush2.msra.mxu0 0.0
      %1256 = vmatprep.subr.mxu0 0.0
      %1257 = vmatpush2.msra.mxu0 0.0
      %1258 = vmatprep.subr.mxu0 0.0
      %1259 = vmatpush2.msra.mxu0 0.0
      %1260 = vmatprep.subr.mxu0 0.0
      %1261 = vmatpush2.msra.mxu0 0.0
      %1262 = vmatprep.subr.mxu0 0.0
      %1263 = vmatpush2.msra.mxu0 0.0
      %1264 = vmatprep.mubr.f32.mxu0 0.0
      %1265 = vmatmul.mubr.f32.gmra.mxu0 %v1175
      %v1266 = vpop.f32.mrf.mxu0
      %v1267 = vadd.f32 0.0, %v1266
      %v1268 = vpop.f32.mrf.mxu0
      %1269 = vmatprep.mubr.f32.mxu0 0.0
      %1270 = vmatmul.mubr.f32.gmra.mxu0 %v1176
      %v1271 = vpop.f32.mrf.mxu0
      %v1272 = vadd.f32 0.0, %v1271
      %v1273 = vpop.f32.mrf.mxu0
      %1274 = vmatprep.mubr.f32.mxu0 0.0
      %1275 = vmatmul.mubr.f32.gmra.mxu0 %v1177
      %v1276 = vpop.f32.mrf.mxu0
      %v1277 = vadd.f32 0.0, %v1276
      %v1278 = vpop.f32.mrf.mxu0
      %1279 = vmatprep.mubr.f32.mxu0 0.0
      %1280 = vmatmul.mubr.f32.gmra.mxu0 %v1178
      %v1281 = vpop.f32.mrf.mxu0
      %v1282 = vadd.f32 0.0, %v1281
      %v1283 = vpop.f32.mrf.mxu0
      %1284 = vmatprep.mubr.f32.mxu0 0.0
      %1285 = vmatmul.mubr.f32.gmra.mxu0 %v1179
      %v1286 = vpop.f32.mrf.mxu0
      %v1287 = vadd.f32 0.0, %v1286
      %v1288 = vpop.f32.mrf.mxu0
      %1289 = vmatprep.mubr.f32.mxu0 0.0
      %1290 = vmatmul.mubr.f32.gmra.mxu0 %v1180
      %v1291 = vpop.f32.mrf.mxu0
      %v1292 = vadd.f32 0.0, %v1291
      %v1293 = vpop.f32.mrf.mxu0
      %1294 = vmatprep.mubr.f32.mxu0 0.0
      %1295 = vmatmul.mubr.f32.gmra.mxu0 %v1181
      %v1296 = vpop.f32.mrf.mxu0
      %v1297 = vadd.f32 0.0, %v1296
      %v1298 = vpop.f32.mrf.mxu0
      %1299 = vmatprep.mubr.f32.mxu0 0.0
      %1300 = vmatmul.mubr.f32.gmra.mxu0 %v1182
      %v1301 = vpop.f32.mrf.mxu0
      %v1302 = vadd.f32 0.0, %v1301
      %v1303 = vpop.f32.mrf.mxu0
      %1304 = vdwg.mxu0
      %v1305 = vadd.f32 %v1166, %v1267
      %v1306 = vadd.f32 %v1167, %v1272
      %v1307 = vadd.f32 %v1168, %v1277
      %v1308 = vadd.f32 %v1169, %v1282
      %v1309 = vadd.f32 %v1170, %v1287
      %v1310 = vadd.f32 %v1171, %v1292
      %v1311 = vadd.f32 %v1172, %v1297
      %v1312 = vadd.f32 %v1173, %v1302
      %s1313 = scalar_lea.vmem %s337, 8
      %v1314 = vld [vmem:[%s1313] sm:$0xff]
      %v1315 = vld [vmem:[%s1313 + $0x8] sm:$0xff]
      %v1316 = vld [vmem:[%s1313 + $0x10] sm:$0xff]
      %v1317 = vld [vmem:[%s1313 + $0x18] sm:$0xff]
      %v1318 = vld [vmem:[%s1313 + $0x20] sm:$0xff]
      %v1319 = vld [vmem:[%s1313 + $0x28] sm:$0xff]
      %v1320 = vld [vmem:[%s1313 + $0x30] sm:$0xff]
      %v1321 = vld [vmem:[%s1313 + $0x38] sm:$0xff]
      %s1322 = scalar_lea.vmem %s351, 896
      %v1323 = vld [vmem:[%s1322] sm:$0xff]
      %v1324 = vld [vmem:[%s1322 + $0x8] sm:$0xff]
      %v1325 = vld [vmem:[%s1322 + $0x10] sm:$0xff]
      %v1326 = vld [vmem:[%s1322 + $0x18] sm:$0xff]
      %v1327 = vld [vmem:[%s1322 + $0x20] sm:$0xff]
      %v1328 = vld [vmem:[%s1322 + $0x28] sm:$0xff]
      %v1329 = vld [vmem:[%s1322 + $0x30] sm:$0xff]
      %v1330 = vld [vmem:[%s1322 + $0x38] sm:$0xff]
      %v1331 = vld [vmem:[%s1322 + $0x40] sm:$0xff]
      %v1332 = vld [vmem:[%s1322 + $0x48] sm:$0xff]
      %v1333 = vld [vmem:[%s1322 + $0x50] sm:$0xff]
      %v1334 = vld [vmem:[%s1322 + $0x58] sm:$0xff]
      %v1335 = vld [vmem:[%s1322 + $0x60] sm:$0xff]
      %v1336 = vld [vmem:[%s1322 + $0x68] sm:$0xff]
      %v1337 = vld [vmem:[%s1322 + $0x70] sm:$0xff]
      %v1338 = vld [vmem:[%s1322 + $0x78] sm:$0xff]
      %1339 = vmatprep.subr.mxu0 0.0
      %1340 = vmatpush1.msra.mxu0 %v1338
      %1341 = vmatprep.subr.mxu0 0.0
      %1342 = vmatpush1.msra.mxu0 %v1337
      %1343 = vmatprep.subr.mxu0 0.0
      %1344 = vmatpush1.msra.mxu0 %v1336
      %1345 = vmatprep.subr.mxu0 0.0
      %1346 = vmatpush1.msra.mxu0 %v1335
      %1347 = vmatprep.subr.mxu0 0.0
      %1348 = vmatpush1.msra.mxu0 %v1334
      %1349 = vmatprep.subr.mxu0 0.0
      %1350 = vmatpush1.msra.mxu0 %v1333
      %1351 = vmatprep.subr.mxu0 0.0
      %1352 = vmatpush1.msra.mxu0 %v1332
      %1353 = vmatprep.subr.mxu0 0.0
      %1354 = vmatpush1.msra.mxu0 %v1331
      %1355 = vmatprep.subr.mxu0 0.0
      %1356 = vmatpush1.msra.mxu0 %v1330
      %1357 = vmatprep.subr.mxu0 0.0
      %1358 = vmatpush1.msra.mxu0 %v1329
      %1359 = vmatprep.subr.mxu0 0.0
      %1360 = vmatpush1.msra.mxu0 %v1328
      %1361 = vmatprep.subr.mxu0 0.0
      %1362 = vmatpush1.msra.mxu0 %v1327
      %1363 = vmatprep.subr.mxu0 0.0
      %1364 = vmatpush1.msra.mxu0 %v1326
      %1365 = vmatprep.subr.mxu0 0.0
      %1366 = vmatpush1.msra.mxu0 %v1325
      %1367 = vmatprep.subr.mxu0 0.0
      %1368 = vmatpush1.msra.mxu0 %v1324
      %1369 = vmatprep.subr.mxu0 0.0
      %1370 = vmatpush1.msra.mxu0 %v1323
      %1371 = vmatprep.subr.mxu0 0.0
      %1372 = vmatpush2.msra.mxu0 0.0
      %1373 = vmatprep.subr.mxu0 0.0
      %1374 = vmatpush2.msra.mxu0 0.0
      %1375 = vmatprep.subr.mxu0 0.0
      %1376 = vmatpush2.msra.mxu0 0.0
      %1377 = vmatprep.subr.mxu0 0.0
      %1378 = vmatpush2.msra.mxu0 0.0
      %1379 = vmatprep.subr.mxu0 0.0
      %1380 = vmatpush2.msra.mxu0 0.0
      %1381 = vmatprep.subr.mxu0 0.0
      %1382 = vmatpush2.msra.mxu0 0.0
      %1383 = vmatprep.subr.mxu0 0.0
      %1384 = vmatpush2.msra.mxu0 0.0
      %1385 = vmatprep.subr.mxu0 0.0
      %1386 = vmatpush2.msra.mxu0 0.0
      %1387 = vmatprep.subr.mxu0 0.0
      %1388 = vmatpush2.msra.mxu0 0.0
      %1389 = vmatprep.subr.mxu0 0.0
      %1390 = vmatpush2.msra.mxu0 0.0
      %1391 = vmatprep.subr.mxu0 0.0
      %1392 = vmatpush2.msra.mxu0 0.0
      %1393 = vmatprep.subr.mxu0 0.0
      %1394 = vmatpush2.msra.mxu0 0.0
      %1395 = vmatprep.subr.mxu0 0.0
      %1396 = vmatpush2.msra.mxu0 0.0
      %1397 = vmatprep.subr.mxu0 0.0
      %1398 = vmatpush2.msra.mxu0 0.0
      %1399 = vmatprep.subr.mxu0 0.0
      %1400 = vmatpush2.msra.mxu0 0.0
      %1401 = vmatprep.subr.mxu0 0.0
      %1402 = vmatpush2.msra.mxu0 0.0
      %1403 = vmatprep.mubr.f32.mxu0 0.0
      %1404 = vmatmul.mubr.f32.gmra.mxu0 %v1314
      %v1405 = vpop.f32.mrf.mxu0
      %v1406 = vadd.f32 0.0, %v1405
      %v1407 = vpop.f32.mrf.mxu0
      %1408 = vmatprep.mubr.f32.mxu0 0.0
      %1409 = vmatmul.mubr.f32.gmra.mxu0 %v1315
      %v1410 = vpop.f32.mrf.mxu0
      %v1411 = vadd.f32 0.0, %v1410
      %v1412 = vpop.f32.mrf.mxu0
      %1413 = vmatprep.mubr.f32.mxu0 0.0
      %1414 = vmatmul.mubr.f32.gmra.mxu0 %v1316
      %v1415 = vpop.f32.mrf.mxu0
      %v1416 = vadd.f32 0.0, %v1415
      %v1417 = vpop.f32.mrf.mxu0
      %1418 = vmatprep.mubr.f32.mxu0 0.0
      %1419 = vmatmul.mubr.f32.gmra.mxu0 %v1317
      %v1420 = vpop.f32.mrf.mxu0
      %v1421 = vadd.f32 0.0, %v1420
      %v1422 = vpop.f32.mrf.mxu0
      %1423 = vmatprep.mubr.f32.mxu0 0.0
      %1424 = vmatmul.mubr.f32.gmra.mxu0 %v1318
      %v1425 = vpop.f32.mrf.mxu0
      %v1426 = vadd.f32 0.0, %v1425
      %v1427 = vpop.f32.mrf.mxu0
      %1428 = vmatprep.mubr.f32.mxu0 0.0
      %1429 = vmatmul.mubr.f32.gmra.mxu0 %v1319
      %v1430 = vpop.f32.mrf.mxu0
      %v1431 = vadd.f32 0.0, %v1430
      %v1432 = vpop.f32.mrf.mxu0
      %1433 = vmatprep.mubr.f32.mxu0 0.0
      %1434 = vmatmul.mubr.f32.gmra.mxu0 %v1320
      %v1435 = vpop.f32.mrf.mxu0
      %v1436 = vadd.f32 0.0, %v1435
      %v1437 = vpop.f32.mrf.mxu0
      %1438 = vmatprep.mubr.f32.mxu0 0.0
      %1439 = vmatmul.mubr.f32.gmra.mxu0 %v1321
      %v1440 = vpop.f32.mrf.mxu0
      %v1441 = vadd.f32 0.0, %v1440
      %v1442 = vpop.f32.mrf.mxu0
      %1443 = vdwg.mxu0
      %v1444 = vadd.f32 %v1305, %v1406
      %v1445 = vadd.f32 %v1306, %v1411
      %v1446 = vadd.f32 %v1307, %v1416
      %v1447 = vadd.f32 %v1308, %v1421
      %v1448 = vadd.f32 %v1309, %v1426
      %v1449 = vadd.f32 %v1310, %v1431
      %v1450 = vadd.f32 %v1311, %v1436
      %v1451 = vadd.f32 %v1312, %v1441
      %v1452 = vld [vmem:[%s1174 + $0x1] sm:$0xff]
      %v1453 = vld [vmem:[%s1174 + $0x11] sm:$0xff]
      %v1454 = vld [vmem:[%s1174 + $0x21] sm:$0xff]
      %v1455 = vld [vmem:[%s1174 + $0x31] sm:$0xff]
      %v1456 = vld [vmem:[%s1174 + $0x41] sm:$0xff]
      %v1457 = vld [vmem:[%s1174 + $0x51] sm:$0xff]
      %v1458 = vld [vmem:[%s1174 + $0x61] sm:$0xff]
      %v1459 = vld [vmem:[%s1174 + $0x71] sm:$0xff]
      %s1460 = scalar_lea.vmem %s351, 1024
      %v1461 = vld [vmem:[%s1460] sm:$0xff]
      %v1462 = vld [vmem:[%s1460 + $0x8] sm:$0xff]
      %v1463 = vld [vmem:[%s1460 + $0x10] sm:$0xff]
      %v1464 = vld [vmem:[%s1460 + $0x18] sm:$0xff]
      %v1465 = vld [vmem:[%s1460 + $0x20] sm:$0xff]
      %v1466 = vld [vmem:[%s1460 + $0x28] sm:$0xff]
      %v1467 = vld [vmem:[%s1460 + $0x30] sm:$0xff]
      %v1468 = vld [vmem:[%s1460 + $0x38] sm:$0xff]
      %v1469 = vld [vmem:[%s1460 + $0x40] sm:$0xff]
      %v1470 = vld [vmem:[%s1460 + $0x48] sm:$0xff]
      %v1471 = vld [vmem:[%s1460 + $0x50] sm:$0xff]
      %v1472 = vld [vmem:[%s1460 + $0x58] sm:$0xff]
      %v1473 = vld [vmem:[%s1460 + $0x60] sm:$0xff]
      %v1474 = vld [vmem:[%s1460 + $0x68] sm:$0xff]
      %v1475 = vld [vmem:[%s1460 + $0x70] sm:$0xff]
      %v1476 = vld [vmem:[%s1460 + $0x78] sm:$0xff]
      %1477 = vmatprep.subr.mxu0 0.0
      %1478 = vmatpush1.msra.mxu0 %v1476
      %1479 = vmatprep.subr.mxu0 0.0
      %1480 = vmatpush1.msra.mxu0 %v1475
      %1481 = vmatprep.subr.mxu0 0.0
      %1482 = vmatpush1.msra.mxu0 %v1474
      %1483 = vmatprep.subr.mxu0 0.0
      %1484 = vmatpush1.msra.mxu0 %v1473
      %1485 = vmatprep.subr.mxu0 0.0
      %1486 = vmatpush1.msra.mxu0 %v1472
      %1487 = vmatprep.subr.mxu0 0.0
      %1488 = vmatpush1.msra.mxu0 %v1471
      %1489 = vmatprep.subr.mxu0 0.0
      %1490 = vmatpush1.msra.mxu0 %v1470
      %1491 = vmatprep.subr.mxu0 0.0
      %1492 = vmatpush1.msra.mxu0 %v1469
      %1493 = vmatprep.subr.mxu0 0.0
      %1494 = vmatpush1.msra.mxu0 %v1468
      %1495 = vmatprep.subr.mxu0 0.0
      %1496 = vmatpush1.msra.mxu0 %v1467
      %1497 = vmatprep.subr.mxu0 0.0
      %1498 = vmatpush1.msra.mxu0 %v1466
      %1499 = vmatprep.subr.mxu0 0.0
      %1500 = vmatpush1.msra.mxu0 %v1465
      %1501 = vmatprep.subr.mxu0 0.0
      %1502 = vmatpush1.msra.mxu0 %v1464
      %1503 = vmatprep.subr.mxu0 0.0
      %1504 = vmatpush1.msra.mxu0 %v1463
      %1505 = vmatprep.subr.mxu0 0.0
      %1506 = vmatpush1.msra.mxu0 %v1462
      %1507 = vmatprep.subr.mxu0 0.0
      %1508 = vmatpush1.msra.mxu0 %v1461
      %1509 = vmatprep.subr.mxu0 0.0
      %1510 = vmatpush2.msra.mxu0 0.0
      %1511 = vmatprep.subr.mxu0 0.0
      %1512 = vmatpush2.msra.mxu0 0.0
      %1513 = vmatprep.subr.mxu0 0.0
      %1514 = vmatpush2.msra.mxu0 0.0
      %1515 = vmatprep.subr.mxu0 0.0
      %1516 = vmatpush2.msra.mxu0 0.0
      %1517 = vmatprep.subr.mxu0 0.0
      %1518 = vmatpush2.msra.mxu0 0.0
      %1519 = vmatprep.subr.mxu0 0.0
      %1520 = vmatpush2.msra.mxu0 0.0
      %1521 = vmatprep.subr.mxu0 0.0
      %1522 = vmatpush2.msra.mxu0 0.0
      %1523 = vmatprep.subr.mxu0 0.0
      %1524 = vmatpush2.msra.mxu0 0.0
      %1525 = vmatprep.subr.mxu0 0.0
      %1526 = vmatpush2.msra.mxu0 0.0
      %1527 = vmatprep.subr.mxu0 0.0
      %1528 = vmatpush2.msra.mxu0 0.0
      %1529 = vmatprep.subr.mxu0 0.0
      %1530 = vmatpush2.msra.mxu0 0.0
      %1531 = vmatprep.subr.mxu0 0.0
      %1532 = vmatpush2.msra.mxu0 0.0
      %1533 = vmatprep.subr.mxu0 0.0
      %1534 = vmatpush2.msra.mxu0 0.0
      %1535 = vmatprep.subr.mxu0 0.0
      %1536 = vmatpush2.msra.mxu0 0.0
      %1537 = vmatprep.subr.mxu0 0.0
      %1538 = vmatpush2.msra.mxu0 0.0
      %1539 = vmatprep.subr.mxu0 0.0
      %1540 = vmatpush2.msra.mxu0 0.0
      %1541 = vmatprep.mubr.f32.mxu0 0.0
      %1542 = vmatmul.mubr.f32.gmra.mxu0 %v1452
      %v1543 = vpop.f32.mrf.mxu0
      %v1544 = vadd.f32 0.0, %v1543
      %v1545 = vpop.f32.mrf.mxu0
      %1546 = vmatprep.mubr.f32.mxu0 0.0
      %1547 = vmatmul.mubr.f32.gmra.mxu0 %v1453
      %v1548 = vpop.f32.mrf.mxu0
      %v1549 = vadd.f32 0.0, %v1548
      %v1550 = vpop.f32.mrf.mxu0
      %1551 = vmatprep.mubr.f32.mxu0 0.0
      %1552 = vmatmul.mubr.f32.gmra.mxu0 %v1454
      %v1553 = vpop.f32.mrf.mxu0
      %v1554 = vadd.f32 0.0, %v1553
      %v1555 = vpop.f32.mrf.mxu0
      %1556 = vmatprep.mubr.f32.mxu0 0.0
      %1557 = vmatmul.mubr.f32.gmra.mxu0 %v1455
      %v1558 = vpop.f32.mrf.mxu0
      %v1559 = vadd.f32 0.0, %v1558
      %v1560 = vpop.f32.mrf.mxu0
      %1561 = vmatprep.mubr.f32.mxu0 0.0
      %1562 = vmatmul.mubr.f32.gmra.mxu0 %v1456
      %v1563 = vpop.f32.mrf.mxu0
      %v1564 = vadd.f32 0.0, %v1563
      %v1565 = vpop.f32.mrf.mxu0
      %1566 = vmatprep.mubr.f32.mxu0 0.0
      %1567 = vmatmul.mubr.f32.gmra.mxu0 %v1457
      %v1568 = vpop.f32.mrf.mxu0
      %v1569 = vadd.f32 0.0, %v1568
      %v1570 = vpop.f32.mrf.mxu0
      %1571 = vmatprep.mubr.f32.mxu0 0.0
      %1572 = vmatmul.mubr.f32.gmra.mxu0 %v1458
      %v1573 = vpop.f32.mrf.mxu0
      %v1574 = vadd.f32 0.0, %v1573
      %v1575 = vpop.f32.mrf.mxu0
      %1576 = vmatprep.mubr.f32.mxu0 0.0
      %1577 = vmatmul.mubr.f32.gmra.mxu0 %v1459
      %v1578 = vpop.f32.mrf.mxu0
      %v1579 = vadd.f32 0.0, %v1578
      %v1580 = vpop.f32.mrf.mxu0
      %1581 = vdwg.mxu0
      %v1582 = vadd.f32 %v1444, %v1544
      %v1583 = vadd.f32 %v1445, %v1549
      %v1584 = vadd.f32 %v1446, %v1554
      %v1585 = vadd.f32 %v1447, %v1559
      %v1586 = vadd.f32 %v1448, %v1564
      %v1587 = vadd.f32 %v1449, %v1569
      %v1588 = vadd.f32 %v1450, %v1574
      %v1589 = vadd.f32 %v1451, %v1579
      %v1590 = vld [vmem:[%s354] sm:$0x1]
      %v1592 = vlaneseq
      %v1593 = vshrl.u32 %v1592, 7
      %v1594 = vsub.s32 0, %v1593
      %v1595 = vrot.slane %v1590, %v1594
      %v1597 = vadd.f32 %v1582, %v1595
      %v1598 = vadd.f32 %v1583, %v1595
      %v1599 = vadd.f32 %v1584, %v1595
      %v1600 = vadd.f32 %v1585, %v1595
      %v1601 = vadd.f32 %v1586, %v1595
      %v1602 = vadd.f32 %v1587, %v1595
      %v1603 = vadd.f32 %v1588, %v1595
      %v1604 = vadd.f32 %v1589, %v1595
      %1605 = vst [vmem:[%s362] sm:$0xff] %v1597
      %1606 = vst [vmem:[%s362 + $0x8] sm:$0xff] %v1598
      %1607 = vst [vmem:[%s362 + $0x10] sm:$0xff] %v1599
      %1608 = vst [vmem:[%s362 + $0x18] sm:$0xff] %v1600
      %1609 = vst [vmem:[%s362 + $0x20] sm:$0xff] %v1601
      %1610 = vst [vmem:[%s362 + $0x28] sm:$0xff] %v1602
      %1611 = vst [vmem:[%s362 + $0x30] sm:$0xff] %v1603
      %1612 = vst [vmem:[%s362 + $0x38] sm:$0xff] %v1604
      %p1613 = scmp.lt.s32.totalorder %s21, 1
      %s1614 = scalar_select %p1613, %s21, 1
      %p1615 = scmp.lt.s32.totalorder %s22, 0
      %s1616 = scalar_select %p1615, %s22, 0
      %s1617 = smul.addr %s1614, 8
      %s1618 = sadd.s32 %s1616, %s1617
      %s1619 = smul.addr %s1618, 8
      %s1620 = scalar_lea.vmem %s6, %s1619
      // Predicated region
      $region45: #{downsample_forward.1} parent=43 // pred_check
        %p1621 = pneg %p205
      $region46: #{downsample_forward.1} parent=43 // pred_check_branch
        %1623 = sbr.rel (%p1621) target = $region48
      $region47: #{downsample_forward.1} parent=43 // pred_region
        _
      $region48: #{downsample_forward.1} parent=43 // pred_fallthru
        _
    $region44: #{downsample_forward.1} parent=5 // pred_fallthru
      _
    %p1624 = scmp.le.s32.totalorder 2, %s12
    // Predicated region
    $region49: #{downsample_forward.1} parent=5 // pred_check
      %p1625 = pneg %p1624
    $region50: #{downsample_forward.1} parent=5 // pred_check_branch
      %1627 = sbr.rel (%p1625) target = $region52
    $region51: #{downsample_forward.1} parent=5 // pred_region
      %s1628 = ssub.s32 %s12, 2
      // Predicated region
      $region53: #{downsample_forward.1} parent=51 // pred_check
        %p1629 = pneg %p211
      $region54: #{downsample_forward.1} parent=51 // pred_check_branch
        %1631 = sbr.rel (%p1629) target = $region56
      $region55: #{downsample_forward.1} parent=51 // pred_region
        %p1632 = scmp.lt.s32.totalorder %s23, 1
        %s1633 = scalar_select %p1632, %s23, 1
        %p1634 = scmp.lt.s32.totalorder %s24, 0
        %s1635 = scalar_select %p1634, %s24, 0
        %s1636 = smul.addr %s1633, 8
        %s1637 = sadd.s32 %s1635, %s1636
        %s1638 = smul.addr %s1637, 8
        %s1639 = scalar_lea.vmem %s6, %s1638
      $region56: #{downsample_forward.1} parent=51 // pred_fallthru
        _
    $region52: #{downsample_forward.1} parent=5 // pred_fallthru
      _
  $region6: #{downsample_forward.1} parent=0 // loop_footer
    %s16 = sadd.s32 1, %s12
  $region7: #{downsample_forward.1} parent=0 // loop_footer_branch
    %11 = sbr.rel target = $region3
  $region8: #{downsample_forward.1} parent=0 // loop_exit
    _

</llo_original>
